<compile_context>
chip_gen: v5e
topology: v5e:2x2
jax: 0.10.0
libtpu: 0.0.40
codegen_flags: <defaults>
</compile_context>

<pallas_src>
import jax
import jax.numpy as jnp
from jax.experimental import pallas as pl
from jax.experimental.pallas import tpu as pltpu

# Logical (PyTorch) dims and their 128-lane padded versions.
D_IN = 784                      # 784 = 6.125*128: left unpadded in HBM
D_H, D_H_PAD = 400, 512         # 512 = 4 * 128
D_OUT, D_OUT_PAD = 10, 128      # lane-dense output slab


def mlp_kernel(x_ref, w1_ref, b1_ref, w2_ref, b2_ref, w3_ref, b3_ref, o_ref):
    # f32 -> bf16 cast in-kernel (VPU; hidden under MXU which is the
    # saturating unit).
    x = x_ref[...].astype(jnp.bfloat16)

    # Hoisted bias reads (f32), used exactly once each.
    b1 = b1_ref[...]
    b2 = b2_ref[...]
    b3 = b3_ref[...]

    # fc1 + ReLU  (bf16 operands, f32 accumulation)
    h1 = jnp.dot(x, w1_ref[...], preferred_element_type=jnp.float32)
    h1 = jnp.maximum(h1 + b1, 0.0).astype(jnp.bfloat16)

    # fc2 + ReLU
    h2 = jnp.dot(h1, w2_ref[...], preferred_element_type=jnp.float32)
    h2 = jnp.maximum(h2 + b2, 0.0).astype(jnp.bfloat16)

    # fc_final (no activation); lane-dense (bm, 128) store.
    out = jnp.dot(h2, w3_ref[...], preferred_element_type=jnp.float32)
    o_ref[...] = (out + b3).astype(o_ref.dtype)


def _pad2(a, rows, cols):
    return jnp.pad(a, ((0, rows - a.shape[0]), (0, cols - a.shape[1])))


def prepare_params(params):
    """One-time pad + bf16 cast of the Linear params (call once, reuse)."""
    w1, b1, w2, b2, w3, b3 = params   # (784,400),(1,400),(400,400),(1,400),(400,10),(1,10)
    w1p = _pad2(w1.astype(jnp.float32), D_IN, D_H_PAD).astype(jnp.bfloat16)
    b1p = _pad2(b1.astype(jnp.float32).reshape(1, -1), 1, D_H_PAD)
    w2p = _pad2(w2.astype(jnp.float32), D_H_PAD, D_H_PAD).astype(jnp.bfloat16)
    b2p = _pad2(b2.astype(jnp.float32).reshape(1, -1), 1, D_H_PAD)
    w3p = _pad2(w3.astype(jnp.float32), D_H_PAD, D_OUT_PAD).astype(jnp.bfloat16)
    b3p = _pad2(b3.astype(jnp.float32).reshape(1, -1), 1, D_OUT_PAD)
    return (w1p, b1p, w2p, b2p, w3p, b3p)


def _round_up(v, m):
    return ((v + m - 1) // m) * m


def _choose_bm(n, bm_max):
    # >= 2 grid steps when the batch allows it (v7x dual-TensorCore sharding),
    # rows rounded to the 8-sublane granule, capped at bm_max (overhead / MXU
    # sweet spot), floored at 8.
    return max(8, min(bm_max, _round_up(pl.cdiv(n, 2), 8)))


def net_forward(x, prepared_params, *, bm_max=512):
    """x: (N, 1, 28, 28) or (N, 784) float32. Returns logits (N, 10) float32."""
    w1p, b1p, w2p, b2p, w3p, b3p = prepared_params

    x2d = x.reshape(-1, D_IN)              # matches x.view(-1, 784); no pad/cast
    n = x2d.shape[0]
    bm = _choose_bm(n, bm_max)
    grid = (pl.cdiv(n, bm),)

    out = pl.pallas_call(
        mlp_kernel,
        out_shape=jax.ShapeDtypeStruct((n, D_OUT_PAD), jnp.float32),
        grid=grid,
        in_specs=[
            pl.BlockSpec((bm, D_IN), lambda i: (i, 0)),           # x tile (f32, unpadded K)
            pl.BlockSpec((D_IN, D_H_PAD), lambda i: (0, 0)),      # W1 (full, bf16)
            pl.BlockSpec((1, D_H_PAD), lambda i: (0, 0)),         # b1 (f32)
            pl.BlockSpec((D_H_PAD, D_H_PAD), lambda i: (0, 0)),   # W2 (full, bf16)
            pl.BlockSpec((1, D_H_PAD), lambda i: (0, 0)),         # b2 (f32)
            pl.BlockSpec((D_H_PAD, D_OUT_PAD), lambda i: (0, 0)), # W3 (full, bf16)
            pl.BlockSpec((1, D_OUT_PAD), lambda i: (0, 0)),       # b3 (f32)
        ],
        out_specs=pl.BlockSpec((bm, D_OUT_PAD), lambda i: (i, 0)),
        compiler_params=pltpu.CompilerParams(
            dimension_semantics=("parallel",),   # batch tiles shard across TCs on v7x
            vmem_limit_bytes=32 * 1024 * 1024,   # ~10 MiB footprint at bm=512
        ),
    )(x2d, w1p, b1p, w2p, b2p, w3p, b3p)

    return out[:, :D_OUT]


def init_params(key):
    """Deterministic init mirroring nn.Linear shapes (stored as (in, out))."""
    k1, k2, k3, k4, k5, k6 = jax.random.split(key, 6)

    def linear(kw, kb, fan_in, fan_out):
        bound = 1.0 / jnp.sqrt(fan_in)
        w = jax.random.uniform(kw, (fan_in, fan_out), jnp.float32, -bound, bound)
        b = jax.random.uniform(kb, (1, fan_out), jnp.float32, -bound, bound)
        return w, b

    w1, b1 = linear(k1, k2, D_IN, D_H)
    w2, b2 = linear(k3, k4, D_H, D_H)
    w3, b3 = linear(k5, k6, D_H, D_OUT)
    return (w1, b1, w2, b2, w3, b3)


if __name__ == "__main__":
    key = jax.random.PRNGKey(0)
    kx, kp = jax.random.split(key)

    # Small MNIST-like batch: N=20 (not a tile multiple) exercises the
    # >=2-step grid and the masked partial trailing block.
    x = jax.random.normal(kx, (20, 1, 28, 28), dtype=jnp.float32)
    params = init_params(kp)

    prepared = prepare_params(params)     # one-time weight pad + bf16 cast
    fwd = jax.jit(net_forward)

    logits = fwd(x, prepared)
    jax.block_until_ready(logits)

    # sanity: f32 reference in plain JAX (bf16 matmuls => loose tolerance)
    x2d = x.reshape(-1, D_IN)
    w1, b1, w2, b2, w3, b3 = params
    h1 = jnp.maximum(x2d @ w1 + b1, 0.0)
    h2 = jnp.maximum(h1 @ w2 + b2, 0.0)
    ref = h2 @ w3 + b3

    assert logits.shape == (20, D_OUT)
    assert jnp.allclose(logits, ref, atol=5e-2, rtol=5e-2), (
        float(jnp.max(jnp.abs(logits - ref))))

    print("KERNEL_OK")
</pallas_src>

<mosaic_0001>
module attributes {stable_mosaic.version = 11 : i64} {
  func.func @mlp_kernel(%arg0: i32, %arg1: memref<16x784xf32, #tpu.memory_space<vmem>>, %arg2: memref<784x512xbf16, #tpu.memory_space<vmem>>, %arg3: memref<1x512xf32, #tpu.memory_space<vmem>>, %arg4: memref<512x512xbf16, #tpu.memory_space<vmem>>, %arg5: memref<1x512xf32, #tpu.memory_space<vmem>>, %arg6: memref<512x128xbf16, #tpu.memory_space<vmem>>, %arg7: memref<1x128xf32, #tpu.memory_space<vmem>>, %arg8: memref<16x128xf32, #tpu.memory_space<vmem>>) attributes {dimension_semantics = [#tpu.dimension_semantics<parallel>], iteration_bounds = array<i64: 2>, scalar_prefetch = 0 : i64, scratch_operands = 0 : i64, tpu.core_type = #tpu.core_type<tc>, window_params = [{transform_indices = @transform_0, window_bounds = array<i64: 16, 784>}, {pipeline_mode = #tpu.pipeline_mode<synchronous>, transform_indices = @transform_1, window_bounds = array<i64: 784, 512>}, {pipeline_mode = #tpu.pipeline_mode<synchronous>, transform_indices = @transform_2, window_bounds = array<i64: 1, 512>}, {pipeline_mode = #tpu.pipeline_mode<synchronous>, transform_indices = @transform_3, window_bounds = array<i64: 512, 512>}, {pipeline_mode = #tpu.pipeline_mode<synchronous>, transform_indices = @transform_4, window_bounds = array<i64: 1, 512>}, {pipeline_mode = #tpu.pipeline_mode<synchronous>, transform_indices = @transform_5, window_bounds = array<i64: 512, 128>}, {pipeline_mode = #tpu.pipeline_mode<synchronous>, transform_indices = @transform_6, window_bounds = array<i64: 1, 128>}, {transform_indices = @transform_7, window_bounds = array<i64: 16, 128>}]} {
    %c0 = arith.constant 0 : index
    %c0_0 = arith.constant 0 : index
    %0 = vector.load %arg1[%c0, %c0_0] : memref<16x784xf32, #tpu.memory_space<vmem>>, vector<16x784xf32>
    %1 = arith.truncf %0 : vector<16x784xf32> to vector<16x784xbf16>
    %c0_1 = arith.constant 0 : index
    %c0_2 = arith.constant 0 : index
    %2 = vector.load %arg3[%c0_1, %c0_2] : memref<1x512xf32, #tpu.memory_space<vmem>>, vector<1x512xf32>
    %c0_3 = arith.constant 0 : index
    %c0_4 = arith.constant 0 : index
    %3 = vector.load %arg5[%c0_3, %c0_4] : memref<1x512xf32, #tpu.memory_space<vmem>>, vector<1x512xf32>
    %c0_5 = arith.constant 0 : index
    %c0_6 = arith.constant 0 : index
    %4 = vector.load %arg7[%c0_5, %c0_6] : memref<1x128xf32, #tpu.memory_space<vmem>>, vector<1x128xf32>
    %c0_7 = arith.constant 0 : index
    %c0_8 = arith.constant 0 : index
    %5 = vector.load %arg2[%c0_7, %c0_8] : memref<784x512xbf16, #tpu.memory_space<vmem>>, vector<784x512xbf16>
    %cst = arith.constant dense<0.000000e+00> : vector<16x512xf32>
    %6 = tpu.matmul %1, %5, %cst {dimension_numbers = #tpu.dot_dimension_numbers<[1], [0], [0], [1], [0, 0, 1, 1], [], []>} : vector<16x784xbf16>, vector<784x512xbf16>, vector<16x512xf32> -> vector<16x512xf32>
    %7 = vector.broadcast %2 : vector<1x512xf32> to vector<16x512xf32>
    %8 = arith.addf %6, %7 : vector<16x512xf32>
    %cst_9 = arith.constant 0.000000e+00 : f32
    %9 = vector.broadcast %cst_9 : f32 to vector<16x512xf32>
    %10 = arith.maximumf %8, %9 : vector<16x512xf32>
    %11 = arith.truncf %10 : vector<16x512xf32> to vector<16x512xbf16>
    %c0_10 = arith.constant 0 : index
    %c0_11 = arith.constant 0 : index
    %12 = vector.load %arg4[%c0_10, %c0_11] : memref<512x512xbf16, #tpu.memory_space<vmem>>, vector<512x512xbf16>
    %cst_12 = arith.constant dense<0.000000e+00> : vector<16x512xf32>
    %13 = tpu.matmul %11, %12, %cst_12 {dimension_numbers = #tpu.dot_dimension_numbers<[1], [0], [0], [1], [0, 0, 1, 1], [], []>} : vector<16x512xbf16>, vector<512x512xbf16>, vector<16x512xf32> -> vector<16x512xf32>
    %14 = vector.broadcast %3 : vector<1x512xf32> to vector<16x512xf32>
    %15 = arith.addf %13, %14 : vector<16x512xf32>
    %cst_13 = arith.constant 0.000000e+00 : f32
    %16 = vector.broadcast %cst_13 : f32 to vector<16x512xf32>
    %17 = arith.maximumf %15, %16 : vector<16x512xf32>
    %18 = arith.truncf %17 : vector<16x512xf32> to vector<16x512xbf16>
    %c0_14 = arith.constant 0 : index
    %c0_15 = arith.constant 0 : index
    %19 = vector.load %arg6[%c0_14, %c0_15] : memref<512x128xbf16, #tpu.memory_space<vmem>>, vector<512x128xbf16>
    %cst_16 = arith.constant dense<0.000000e+00> : vector<16x128xf32>
    %20 = tpu.matmul %18, %19, %cst_16 {dimension_numbers = #tpu.dot_dimension_numbers<[1], [0], [0], [1], [0, 0, 1, 1], [], []>} : vector<16x512xbf16>, vector<512x128xbf16>, vector<16x128xf32> -> vector<16x128xf32>
    %21 = vector.broadcast %4 : vector<1x128xf32> to vector<16x128xf32>
    %22 = arith.addf %20, %21 : vector<16x128xf32>
    %c0_17 = arith.constant 0 : index
    %c0_18 = arith.constant 0 : index
    %23 = vector.load %arg8[%c0_17, %c0_18] : memref<16x128xf32, #tpu.memory_space<vmem>>, vector<16x128xf32>
    tpu.vector_store %arg8[%c0_17, %c0_18], %22 {strides = array<i32>} : memref<16x128xf32, #tpu.memory_space<vmem>>, vector<16x128xf32>,
    return
  }
  func.func @transform_0(%arg0: i32) -> (i32, i32) {
    %c0_i32 = arith.constant 0 : i32
    %c0_i32_0 = arith.constant 0 : i32
    return %arg0, %c0_i32 : i32, i32
  }
  func.func @transform_1(%arg0: i32) -> (i32, i32) {
    %c0_i32 = arith.constant 0 : i32
    %c0_i32_0 = arith.constant 0 : i32
    %c0_i32_1 = arith.constant 0 : i32
    return %c0_i32, %c0_i32_0 : i32, i32
  }
  func.func @transform_2(%arg0: i32) -> (i32, i32) {
    %c0_i32 = arith.constant 0 : i32
    %c0_i32_0 = arith.constant 0 : i32
    %c0_i32_1 = arith.constant 0 : i32
    return %c0_i32, %c0_i32_0 : i32, i32
  }
  func.func @transform_3(%arg0: i32) -> (i32, i32) {
    %c0_i32 = arith.constant 0 : i32
    %c0_i32_0 = arith.constant 0 : i32
    %c0_i32_1 = arith.constant 0 : i32
    return %c0_i32, %c0_i32_0 : i32, i32
  }
  func.func @transform_4(%arg0: i32) -> (i32, i32) {
    %c0_i32 = arith.constant 0 : i32
    %c0_i32_0 = arith.constant 0 : i32
    %c0_i32_1 = arith.constant 0 : i32
    return %c0_i32, %c0_i32_0 : i32, i32
  }
  func.func @transform_5(%arg0: i32) -> (i32, i32) {
    %c0_i32 = arith.constant 0 : i32
    %c0_i32_0 = arith.constant 0 : i32
    %c0_i32_1 = arith.constant 0 : i32
    return %c0_i32, %c0_i32_0 : i32, i32
  }
  func.func @transform_6(%arg0: i32) -> (i32, i32) {
    %c0_i32 = arith.constant 0 : i32
    %c0_i32_0 = arith.constant 0 : i32
    %c0_i32_1 = arith.constant 0 : i32
    return %c0_i32, %c0_i32_0 : i32, i32
  }
  func.func @transform_7(%arg0: i32) -> (i32, i32) {
    %c0_i32 = arith.constant 0 : i32
    %c0_i32_0 = arith.constant 0 : i32
    return %arg0, %c0_i32 : i32, i32
  }
}

</mosaic_0001>

<llo_original>
// kernel: net_forward.1
$region0: #{net_forward.1}
  #allocation0 [shape = 'u32[]', space=smem, size = 0x4, offset = 0x4, fixed_abs, tag = 'smem constant byte address 0x4 - core index']
  #allocation1 [shape = 'u32[72,128]{1,0:T(1,128)}', space=vmem, size = 0x9000, scoped, tag = 'internal scratch']
  %s0 = inlined_call_operand.vmem [shape: f32[20,784], index: 0, kind: input, shape index: {}]
  %s1 = inlined_call_operand.vmem [shape: bf16[784,512], index: 1, kind: input, shape index: {}]
  %s2 = inlined_call_operand.vmem [shape: f32[1,512], index: 2, kind: input, shape index: {}]
  %s3 = inlined_call_operand.hbm [shape: bf16[512,512], index: 3, kind: input, shape index: {}]
  %s4 = inlined_call_operand.vmem [shape: f32[1,512], index: 4, kind: input, shape index: {}]
  %s5 = inlined_call_operand.vmem [shape: bf16[512,128], index: 5, kind: input, shape index: {}]
  %s6 = inlined_call_operand.vmem [shape: f32[1,128], index: 6, kind: input, shape index: {}]
  %s7 = inlined_call_operand.vmem [shape: f32[20,128], index: 7, kind: output, shape index: {}]
  %s8 = sld [smem:[#allocation0]]
  $region113: #{net_forward.1} parent=0
    _
  %s10 = ssub.s32 1, %s8
  %s11 = scalar_select 0, %s10, %s8
  $region1: #{net_forward.1} parent=0
    #allocation2 [shape = 'u8[524288]{0}', space=vmem, size = 0x80000, scoped, tag = 'input window, operand 3, single buffered']
    #allocation3 [shape = 's32[2]{0}', space=sflag, size = 0x8, scoped, tag = 'scoped memory for net_forward.1']
    #allocation4 [shape = 'u8[16384]{0}', space=vmem, size = 0x4000, scoped, tag = 'output window, operand 0']
    %12 = vsyncpa [#allocation3], 0
    loop: start=0, step=1, limit=4
    $region2: #{net_forward.1} parent=1 // loop_pre_header
      _
    $region3: #{net_forward.1} parent=1 // loop_header
      %s14 = sphi 0, %s18
      %p15 = scmp.ge.s32.totalorder %s14, 4
      %s24 = sphi 0, %s26
      %s27 = sphi 0, %s24
      %s28 = sphi 0, %s27
      %s44 = sphi 0, %s28
      %s48 = sphi 0, %s48
      %s50 = sphi 0, %s48
      %s51 = sphi 0, %s50
      %s65 = sphi 0, %s51
      %s69 = sphi 0, %s69
      %s71 = sphi 0, %s69
      %s72 = sphi 0, %s71
      %s86 = sphi 0, %s72
      %s90 = sphi 0, %s90
      %s92 = sphi 0, %s90
      %s93 = sphi 0, %s92
      %s107 = sphi 0, %s93
      %s111 = sphi 0, %s111
      %s113 = sphi 0, %s111
      %s114 = sphi 0, %s113
      %s128 = sphi 0, %s114
      %s132 = sphi 0, %s132
      %s134 = sphi 0, %s132
      %s135 = sphi 0, %s134
      %s149 = sphi 0, %s135
      %s153 = sphi 0, %s153
      %s155 = sphi 0, %s153
      %s156 = sphi 0, %s155
      %s170 = sphi 0, %s156
      %s176 = sphi 0, %s178
      %s179 = sphi 0, %s176
      %s180 = sphi 0, %s179
      %s196 = sphi 0, %s180
    $region4: #{net_forward.1} parent=1 // loop_header_branch
      %17 = sbr.rel (%p15) target = $region8
    $region5: #{net_forward.1} parent=1 // loop_body
      %s19 = ssub.s32 %s14, 1
      %s20 = ssub.s32 %s14, 2
      %s21 = sadd.s32 %s14, 1
      %s22 = ssub.s32 %s14, %s21
      %p23 = scmp.eq.s32.totalorder %s22, 0
      %s25 = sadd.s32 %s24, 1
      %s26 = scalar_select %p23, %s24, %s25
      %p29 = pneg %p23
      %p30 = scmp.eq.s32.totalorder %s14, 1
      %p31 = por %p29, %p30
      %p32 = scmp.ne.s32.totalorder %s24, %s27
      %p33 = scmp.eq.s32.totalorder %s14, 0
      %p34 = por %p32, %p33
      %p35 = scmp.ne.s32.totalorder %s24, %s27
      %p36 = scmp.eq.s32.totalorder %s19, 1
      %p37 = por %p35, %p36
      %p38 = scmp.ne.s32.totalorder %s27, %s28
      %p39 = scmp.eq.s32.totalorder %s19, 0
      %p40 = por %p38, %p39
      %p41 = scmp.ne.s32.totalorder %s27, %s28
      %p42 = scmp.eq.s32.totalorder %s20, 1
      %p43 = por %p41, %p42
      %p45 = scmp.ne.s32.totalorder %s28, %s44
      %p46 = scmp.eq.s32.totalorder %s20, 0
      %p47 = por %p45, %p46
      %s49 = sadd.s32 %s48, 1
      %p52 = scmp.eq.s32.totalorder %s14, 1
      %p53 = scmp.ne.s32.totalorder %s48, %s50
      %p54 = scmp.eq.s32.totalorder %s14, 0
      %p55 = por %p53, %p54
      %p56 = scmp.ne.s32.totalorder %s48, %s50
      %p57 = scmp.eq.s32.totalorder %s19, 1
      %p58 = por %p56, %p57
      %p59 = scmp.ne.s32.totalorder %s50, %s51
      %p60 = scmp.eq.s32.totalorder %s19, 0
      %p61 = por %p59, %p60
      %p62 = scmp.ne.s32.totalorder %s50, %s51
      %p63 = scmp.eq.s32.totalorder %s20, 1
      %p64 = por %p62, %p63
      %p66 = scmp.ne.s32.totalorder %s51, %s65
      %p67 = scmp.eq.s32.totalorder %s20, 0
      %p68 = por %p66, %p67
      %s70 = sadd.s32 %s69, 1
      %p73 = scmp.eq.s32.totalorder %s14, 1
      %p74 = scmp.ne.s32.totalorder %s69, %s71
      %p75 = scmp.eq.s32.totalorder %s14, 0
      %p76 = por %p74, %p75
      %p77 = scmp.ne.s32.totalorder %s69, %s71
      %p78 = scmp.eq.s32.totalorder %s19, 1
      %p79 = por %p77, %p78
      %p80 = scmp.ne.s32.totalorder %s71, %s72
      %p81 = scmp.eq.s32.totalorder %s19, 0
      %p82 = por %p80, %p81
      %p83 = scmp.ne.s32.totalorder %s71, %s72
      %p84 = scmp.eq.s32.totalorder %s20, 1
      %p85 = por %p83, %p84
      %p87 = scmp.ne.s32.totalorder %s72, %s86
      %p88 = scmp.eq.s32.totalorder %s20, 0
      %p89 = por %p87, %p88
      %s91 = sadd.s32 %s90, 1
      %p94 = scmp.eq.s32.totalorder %s14, 1
      %p95 = scmp.ne.s32.totalorder %s90, %s92
      %p96 = scmp.eq.s32.totalorder %s14, 0
      %p97 = por %p95, %p96
      %p98 = scmp.ne.s32.totalorder %s90, %s92
      %p99 = scmp.eq.s32.totalorder %s19, 1
      %p100 = por %p98, %p99
      %p101 = scmp.ne.s32.totalorder %s92, %s93
      %p102 = scmp.eq.s32.totalorder %s19, 0
      %p103 = por %p101, %p102
      %p104 = scmp.ne.s32.totalorder %s92, %s93
      %p105 = scmp.eq.s32.totalorder %s20, 1
      %p106 = por %p104, %p105
      %p108 = scmp.ne.s32.totalorder %s93, %s107
      %p109 = scmp.eq.s32.totalorder %s20, 0
      %p110 = por %p108, %p109
      %s112 = sadd.s32 %s111, 1
      %p115 = scmp.eq.s32.totalorder %s14, 1
      %p116 = scmp.ne.s32.totalorder %s111, %s113
      %p117 = scmp.eq.s32.totalorder %s14, 0
      %p118 = por %p116, %p117
      %p119 = scmp.ne.s32.totalorder %s111, %s113
      %p120 = scmp.eq.s32.totalorder %s19, 1
      %p121 = por %p119, %p120
      %p122 = scmp.ne.s32.totalorder %s113, %s114
      %p123 = scmp.eq.s32.totalorder %s19, 0
      %p124 = por %p122, %p123
      %p125 = scmp.ne.s32.totalorder %s113, %s114
      %p126 = scmp.eq.s32.totalorder %s20, 1
      %p127 = por %p125, %p126
      %p129 = scmp.ne.s32.totalorder %s114, %s128
      %p130 = scmp.eq.s32.totalorder %s20, 0
      %p131 = por %p129, %p130
      %s133 = sadd.s32 %s132, 1
      %p136 = scmp.eq.s32.totalorder %s14, 1
      %p137 = scmp.ne.s32.totalorder %s132, %s134
      %p138 = scmp.eq.s32.totalorder %s14, 0
      %p139 = por %p137, %p138
      %p140 = scmp.ne.s32.totalorder %s132, %s134
      %p141 = scmp.eq.s32.totalorder %s19, 1
      %p142 = por %p140, %p141
      %p143 = scmp.ne.s32.totalorder %s134, %s135
      %p144 = scmp.eq.s32.totalorder %s19, 0
      %p145 = por %p143, %p144
      %p146 = scmp.ne.s32.totalorder %s134, %s135
      %p147 = scmp.eq.s32.totalorder %s20, 1
      %p148 = por %p146, %p147
      %p150 = scmp.ne.s32.totalorder %s135, %s149
      %p151 = scmp.eq.s32.totalorder %s20, 0
      %p152 = por %p150, %p151
      %s154 = sadd.s32 %s153, 1
      %p157 = scmp.eq.s32.totalorder %s14, 1
      %p158 = scmp.ne.s32.totalorder %s153, %s155
      %p159 = scmp.eq.s32.totalorder %s14, 0
      %p160 = por %p158, %p159
      %p161 = scmp.ne.s32.totalorder %s153, %s155
      %p162 = scmp.eq.s32.totalorder %s19, 1
      %p163 = por %p161, %p162
      %p164 = scmp.ne.s32.totalorder %s155, %s156
      %p165 = scmp.eq.s32.totalorder %s19, 0
      %p166 = por %p164, %p165
      %p167 = scmp.ne.s32.totalorder %s155, %s156
      %p168 = scmp.eq.s32.totalorder %s20, 1
      %p169 = por %p167, %p168
      %p171 = scmp.ne.s32.totalorder %s156, %s170
      %p172 = scmp.eq.s32.totalorder %s20, 0
      %p173 = por %p171, %p172
      %s174 = ssub.s32 %s14, %s21
      %p175 = scmp.eq.s32.totalorder %s174, 0
      %s177 = sadd.s32 %s176, 1
      %s178 = scalar_select %p175, %s176, %s177
      %p181 = pneg %p175
      %p182 = scmp.eq.s32.totalorder %s14, 1
      %p183 = por %p181, %p182
      %p184 = scmp.ne.s32.totalorder %s176, %s179
      %p185 = scmp.eq.s32.totalorder %s14, 0
      %p186 = por %p184, %p185
      %p187 = scmp.ne.s32.totalorder %s176, %s179
      %p188 = scmp.eq.s32.totalorder %s19, 1
      %p189 = por %p187, %p188
      %p190 = scmp.ne.s32.totalorder %s179, %s180
      %p191 = scmp.eq.s32.totalorder %s19, 0
      %p192 = por %p190, %p191
      %p193 = scmp.ne.s32.totalorder %s179, %s180
      %p194 = scmp.eq.s32.totalorder %s20, 1
      %p195 = por %p193, %p194
      %p197 = scmp.ne.s32.totalorder %s180, %s196
      %p198 = scmp.eq.s32.totalorder %s20, 0
      %p199 = por %p197, %p198
      %p200 = scmp.le.s32.totalorder 1, %s14
      %p201 = scmp.lt.s32.totalorder %s14, 3
      %p202 = pnand %p200, %p201
      %p203 = pneg %p202
      // Predicated region
      $region9: #{net_forward.1} parent=5 // pred_check
        _
      $region10: #{net_forward.1} parent=5 // pred_check_branch
        %205 = sbr.rel (%p202) target = $region12
      $region11: #{net_forward.1} parent=5 // pred_region
        %s206 = ssub.s32 %s14, 1
        // Predicated region
        $region13: #{net_forward.1} parent=11 // pred_check
          %p207 = pneg %p61
        $region14: #{net_forward.1} parent=11 // pred_check_branch
          %209 = sbr.rel (%p207) target = $region16
        $region15: #{net_forward.1} parent=11 // pred_region
          _
        $region16: #{net_forward.1} parent=11 // pred_fallthru
          _
        // Predicated region
        $region17: #{net_forward.1} parent=11 // pred_check
          %p210 = pneg %p82
        $region18: #{net_forward.1} parent=11 // pred_check_branch
          %212 = sbr.rel (%p210) target = $region20
        $region19: #{net_forward.1} parent=11 // pred_region
          _
        $region20: #{net_forward.1} parent=11 // pred_fallthru
          _
        // Predicated region
        $region21: #{net_forward.1} parent=11 // pred_check
          %p213 = pneg %p103
        $region22: #{net_forward.1} parent=11 // pred_check_branch
          %215 = sbr.rel (%p213) target = $region24
        $region23: #{net_forward.1} parent=11 // pred_region
          %217 = vsyncadd [#allocation3], 0
          %s218 = sshll.u32 %s3, 4
          %s219 = int_to_ptr.hbm [resolvable:$true] %s218
          %s220 = sshll.u32 [#allocation2], 4
          %s221 = int_to_ptr.vmem [resolvable:$true] %s220
          %226 = dma.hbm_to_vmem [thread:$0]  %s219, 16384, %s221, [#allocation3], 256, 256, 16
        $region24: #{net_forward.1} parent=11 // pred_fallthru
          _
        // Predicated region
        $region25: #{net_forward.1} parent=11 // pred_check
          %p227 = pneg %p124
        $region26: #{net_forward.1} parent=11 // pred_check_branch
          %229 = sbr.rel (%p227) target = $region28
        $region27: #{net_forward.1} parent=11 // pred_region
          _
        $region28: #{net_forward.1} parent=11 // pred_fallthru
          _
        // Predicated region
        $region29: #{net_forward.1} parent=11 // pred_check
          %p230 = pneg %p145
        $region30: #{net_forward.1} parent=11 // pred_check_branch
          %232 = sbr.rel (%p230) target = $region32
        $region31: #{net_forward.1} parent=11 // pred_region
          _
        $region32: #{net_forward.1} parent=11 // pred_fallthru
          _
        // Predicated region
        $region33: #{net_forward.1} parent=11 // pred_check
          %p233 = pneg %p166
        $region34: #{net_forward.1} parent=11 // pred_check_branch
          %235 = sbr.rel (%p233) target = $region36
        $region35: #{net_forward.1} parent=11 // pred_region
          _
        $region36: #{net_forward.1} parent=11 // pred_fallthru
          _
      $region12: #{net_forward.1} parent=5 // pred_fallthru
        _
      %p236 = scmp.lt.s32.totalorder %s14, 2
      // Predicated region
      $region37: #{net_forward.1} parent=5 // pred_check
        %p237 = pneg %p236
      $region38: #{net_forward.1} parent=5 // pred_check_branch
        %239 = sbr.rel (%p237) target = $region40
      $region39: #{net_forward.1} parent=5 // pred_region
        // Predicated region
        $region41: #{net_forward.1} parent=39 // pred_check
          %p240 = pneg %p34
        $region42: #{net_forward.1} parent=39 // pred_check_branch
          %242 = sbr.rel (%p240) target = $region44
        $region43: #{net_forward.1} parent=39 // pred_region
          %s243 = smul.u32 2, %s14
          %s244 = ssub.s32 3, %s243
          %p245 = scmp.lt.s32.totalorder %s244, 2
          %s246 = scalar_select %p245, %s244, 2
          %s247 = smul.u32 8, %s246
          %s248 = smul.u32 %s247, 7
          %p249 = scmp.lt.s32.totalorder %s243, 2
          %s250 = scalar_select %p249, %s243, 2
          %s251 = smul.addr %s250, 7
          %s252 = smul.addr %s251, 8
          %s253 = scalar_lea.vmem %s0, %s252
          %s254 = smul.u32 2, %s14
          %s255 = ssub.s32 3, %s254
          %p256 = scmp.lt.s32.totalorder %s255, 2
          %s257 = scalar_select %p256, %s255, 2
          %s258 = smul.u32 8, %s257
          %s259 = smul.u32 %s258, 7
        $region44: #{net_forward.1} parent=39 // pred_fallthru
          _
      $region40: #{net_forward.1} parent=5 // pred_fallthru
        _
      %p260 = scmp.le.s32.totalorder 1, %s14
      %p261 = scmp.lt.s32.totalorder %s14, 3
      %p262 = pnand %p260, %p261
      %p263 = pneg %p262
      // Predicated region
      $region45: #{net_forward.1} parent=5 // pred_check
        _
      $region46: #{net_forward.1} parent=5 // pred_check_branch
        %265 = sbr.rel (%p262) target = $region48
      $region47: #{net_forward.1} parent=5 // pred_region
        %s266 = ssub.s32 %s14, 1
        // Predicated region
        $region49: #{net_forward.1} parent=47 // pred_check
          %p267 = pneg %p103
        $region50: #{net_forward.1} parent=47 // pred_check_branch
          %269 = sbr.rel (%p267) target = $region52
        $region51: #{net_forward.1} parent=47 // pred_region
          %271 = dma.done [#allocation3], 16384
        $region52: #{net_forward.1} parent=47 // pred_fallthru
          _
        %s272 = smul.u32 2, %s19
        %s273 = ssub.s32 3, %s272
        %p274 = scmp.lt.s32.totalorder %s273, 2
        %s275 = scalar_select %p274, %s273, 2
        %s276 = smul.u32 8, %s275
        %s277 = smul.u32 %s276, 7
        %p278 = scmp.lt.s32.totalorder %s272, 2
        %s279 = scalar_select %p278, %s272, 2
        %s280 = smul.addr %s279, 7
        %s281 = smul.addr %s280, 8
        %s282 = scalar_lea.vmem %s0, %s281
        %p283 = pneg %p40
        %p284 = pneg %p37
        %p285 = pneg %p61
        %p286 = pneg %p58
        %p287 = pneg %p82
        %p288 = pneg %p79
        %p289 = pneg %p103
        %p290 = pneg %p100
        %p291 = pneg %p124
        %p292 = pneg %p121
        %p293 = pneg %p145
        %p294 = pneg %p142
        %p295 = pneg %p166
        %p296 = pneg %p163
        %p297 = pneg %p192
        %p298 = pneg %p189
        %s299 = sand.u32 %s179, 1
        %s300 = sand.u32 %s179, 1
        %s301 = smul.addr %s300, 16
        %s302 = scalar_lea.vmem [#allocation4], %s301
        %s303 = smul.u32 2, %s19
        %s304 = ssub.s32 3, %s303
        %p305 = scmp.lt.s32.totalorder %s304, 2
        %s306 = scalar_select %p305, %s304, 2
        %s307 = smul.u32 8, %s306
        %s308 = smul.u32 %s307, 7
        %p309 = scmp.lt.s32.totalorder %s303, 2
        %s310 = scalar_select %p309, %s303, 2
        %s311 = smul.addr %s310, 7
        %s312 = smul.addr %s311, 8
        %s313 = scalar_lea.vmem %s0, %s312
        %s314 = smul.u32 2, %s19
        %s315 = ssub.s32 3, %s314
        %p316 = scmp.lt.s32.totalorder %s315, 2
        %s317 = scalar_select %p316, %s315, 2
        %s318 = smul.u32 8, %s317
        %s319 = smul.u32 %s318, 7
        %s320 = smul.u32 2, %s19
        %s321 = ssub.s32 3, %s320
        %p322 = scmp.lt.s32.totalorder %s321, 2
        %s323 = scalar_select %p322, %s321, 2
        %s324 = smul.u32 8, %s323
        %v326 = vld [vmem:[%s313] sm:$0xff]
        %v327 = vld [vmem:[%s313 + $0x8] sm:$0xff]
        %v328 = vld [vmem:[%s313 + $0x10] sm:$0xff]
        %v329 = vld [vmem:[%s313 + $0x18] sm:$0xff]
        %v330 = vld [vmem:[%s313 + $0x20] sm:$0xff]
        %v331 = vld [vmem:[%s313 + $0x28] sm:$0xff]
        %v332 = vld [vmem:[%s313 + $0x30] sm:$0xff]
        %v333 = vld [vmem:[%s313 + $0x38] sm:$0xff]
        %v334 = vld [vmem:[%s313 + $0x40] sm:$0xff]
        %v335 = vld [vmem:[%s313 + $0x48] sm:$0xff]
        %v336 = vld [vmem:[%s313 + $0x50] sm:$0xff]
        %v337 = vld [vmem:[%s313 + $0x58] sm:$0xff]
        %v338 = vld [vmem:[%s313 + $0x60] sm:$0xff]
        %v339 = vld [vmem:[%s313 + $0x68] sm:$0xff]
        %v340 = vpack.c.bf16 %v333, %v326
        %v341 = vpack.c.bf16 %v334, %v327
        %v342 = vpack.c.bf16 %v335, %v328
        %v343 = vpack.c.bf16 %v336, %v329
        %v344 = vpack.c.bf16 %v337, %v330
        %v345 = vpack.c.bf16 %v338, %v331
        %v346 = vpack.c.bf16 %v339, %v332
        %v347 = vld [vmem:[%s2] sm:$0xf]
        %v348 = vld [vmem:[%s4] sm:$0xf]
        %v349 = vld [vmem:[%s6] sm:$0x1]
        %v350 = vld [vmem:[%s1] sm:$0xff]
        %v351 = vld [vmem:[%s1 + $0x8] sm:$0xff]
        %v352 = vld [vmem:[%s1 + $0x10] sm:$0xff]
        %v353 = vld [vmem:[%s1 + $0x18] sm:$0xff]
        %v354 = vld [vmem:[%s1 + $0x20] sm:$0xff]
        %v355 = vld [vmem:[%s1 + $0x28] sm:$0xff]
        %v356 = vld [vmem:[%s1 + $0x30] sm:$0xff]
        %v357 = vld [vmem:[%s1 + $0x38] sm:$0xff]
        %v358 = vld [vmem:[%s1 + $0x40] sm:$0xff]
        %v359 = vld [vmem:[%s1 + $0x48] sm:$0xff]
        %v360 = vld [vmem:[%s1 + $0x50] sm:$0xff]
        %v361 = vld [vmem:[%s1 + $0x58] sm:$0xff]
        %v362 = vld [vmem:[%s1 + $0x60] sm:$0xff]
        %v363 = vld [vmem:[%s1 + $0x68] sm:$0xff]
        %v364 = vld [vmem:[%s1 + $0x70] sm:$0xff]
        %v365 = vld [vmem:[%s1 + $0x78] sm:$0xff]
        %v366 = vld [vmem:[%s1 + $0x80] sm:$0xff]
        %v367 = vld [vmem:[%s1 + $0x88] sm:$0xff]
        %v368 = vld [vmem:[%s1 + $0x90] sm:$0xff]
        %v369 = vld [vmem:[%s1 + $0x98] sm:$0xff]
        %v370 = vld [vmem:[%s1 + $0xa0] sm:$0xff]
        %v371 = vld [vmem:[%s1 + $0xa8] sm:$0xff]
        %v372 = vld [vmem:[%s1 + $0xb0] sm:$0xff]
        %v373 = vld [vmem:[%s1 + $0xb8] sm:$0xff]
        %v374 = vld [vmem:[%s1 + $0xc0] sm:$0xff]
        %v375 = vld [vmem:[%s1 + $0xc8] sm:$0xff]
        %v376 = vld [vmem:[%s1 + $0xd0] sm:$0xff]
        %v377 = vld [vmem:[%s1 + $0xd8] sm:$0xff]
        %v378 = vld [vmem:[%s1 + $0xe0] sm:$0xff]
        %v379 = vld [vmem:[%s1 + $0xe8] sm:$0xff]
        %v380 = vld [vmem:[%s1 + $0xf0] sm:$0xff]
        %v381 = vld [vmem:[%s1 + $0xf8] sm:$0xff]
        %v382 = vld [vmem:[%s1 + $0x100] sm:$0xff]
        %v383 = vld [vmem:[%s1 + $0x108] sm:$0xff]
        %v384 = vld [vmem:[%s1 + $0x110] sm:$0xff]
        %v385 = vld [vmem:[%s1 + $0x118] sm:$0xff]
        %v386 = vld [vmem:[%s1 + $0x120] sm:$0xff]
        %v387 = vld [vmem:[%s1 + $0x128] sm:$0xff]
        %v388 = vld [vmem:[%s1 + $0x130] sm:$0xff]
        %v389 = vld [vmem:[%s1 + $0x138] sm:$0xff]
        %v390 = vld [vmem:[%s1 + $0x140] sm:$0xff]
        %v391 = vld [vmem:[%s1 + $0x148] sm:$0xff]
        %v392 = vld [vmem:[%s1 + $0x150] sm:$0xff]
        %v393 = vld [vmem:[%s1 + $0x158] sm:$0xff]
        %v394 = vld [vmem:[%s1 + $0x160] sm:$0xff]
        %v395 = vld [vmem:[%s1 + $0x168] sm:$0xff]
        %v396 = vld [vmem:[%s1 + $0x170] sm:$0xff]
        %v397 = vld [vmem:[%s1 + $0x178] sm:$0xff]
        %v398 = vld [vmem:[%s1 + $0x180] sm:$0xff]
        %v399 = vld [vmem:[%s1 + $0x188] sm:$0xff]
        %v400 = vld [vmem:[%s1 + $0x190] sm:$0xff]
        %v401 = vld [vmem:[%s1 + $0x198] sm:$0xff]
        %v402 = vld [vmem:[%s1 + $0x1a0] sm:$0xff]
        %v403 = vld [vmem:[%s1 + $0x1a8] sm:$0xff]
        %v404 = vld [vmem:[%s1 + $0x1b0] sm:$0xff]
        %v405 = vld [vmem:[%s1 + $0x1b8] sm:$0xff]
        %v406 = vld [vmem:[%s1 + $0x1c0] sm:$0xff]
        %v407 = vld [vmem:[%s1 + $0x1c8] sm:$0xff]
        %v408 = vld [vmem:[%s1 + $0x1d0] sm:$0xff]
        %v409 = vld [vmem:[%s1 + $0x1d8] sm:$0xff]
        %v410 = vld [vmem:[%s1 + $0x1e0] sm:$0xff]
        %v411 = vld [vmem:[%s1 + $0x1e8] sm:$0xff]
        %v412 = vld [vmem:[%s1 + $0x1f0] sm:$0xff]
        %v413 = vld [vmem:[%s1 + $0x1f8] sm:$0xff]
        %v414 = vld [vmem:[%s1 + $0x200] sm:$0xff]
        %v415 = vld [vmem:[%s1 + $0x208] sm:$0xff]
        %v416 = vld [vmem:[%s1 + $0x210] sm:$0xff]
        %v417 = vld [vmem:[%s1 + $0x218] sm:$0xff]
        %v418 = vld [vmem:[%s1 + $0x220] sm:$0xff]
        %v419 = vld [vmem:[%s1 + $0x228] sm:$0xff]
        %v420 = vld [vmem:[%s1 + $0x230] sm:$0xff]
        %v421 = vld [vmem:[%s1 + $0x238] sm:$0xff]
        %v422 = vld [vmem:[%s1 + $0x240] sm:$0xff]
        %v423 = vld [vmem:[%s1 + $0x248] sm:$0xff]
        %v424 = vld [vmem:[%s1 + $0x250] sm:$0xff]
        %v425 = vld [vmem:[%s1 + $0x258] sm:$0xff]
        %v426 = vld [vmem:[%s1 + $0x260] sm:$0xff]
        %v427 = vld [vmem:[%s1 + $0x268] sm:$0xff]
        %v428 = vld [vmem:[%s1 + $0x270] sm:$0xff]
        %v429 = vld [vmem:[%s1 + $0x278] sm:$0xff]
        %v430 = vld [vmem:[%s1 + $0x280] sm:$0xff]
        %v431 = vld [vmem:[%s1 + $0x288] sm:$0xff]
        %v432 = vld [vmem:[%s1 + $0x290] sm:$0xff]
        %v433 = vld [vmem:[%s1 + $0x298] sm:$0xff]
        %v434 = vld [vmem:[%s1 + $0x2a0] sm:$0xff]
        %v435 = vld [vmem:[%s1 + $0x2a8] sm:$0xff]
        %v436 = vld [vmem:[%s1 + $0x2b0] sm:$0xff]
        %v437 = vld [vmem:[%s1 + $0x2b8] sm:$0xff]
        %v438 = vld [vmem:[%s1 + $0x2c0] sm:$0xff]
        %v439 = vld [vmem:[%s1 + $0x2c8] sm:$0xff]
        %v440 = vld [vmem:[%s1 + $0x2d0] sm:$0xff]
        %v441 = vld [vmem:[%s1 + $0x2d8] sm:$0xff]
        %v442 = vld [vmem:[%s1 + $0x2e0] sm:$0xff]
        %v443 = vld [vmem:[%s1 + $0x2e8] sm:$0xff]
        %v444 = vld [vmem:[%s1 + $0x2f0] sm:$0xff]
        %v445 = vld [vmem:[%s1 + $0x2f8] sm:$0xff]
        %v446 = vld [vmem:[%s1 + $0x300] sm:$0xff]
        %v447 = vld [vmem:[%s1 + $0x308] sm:$0xff]
        %v448 = vld [vmem:[%s1 + $0x310] sm:$0xff]
        %v449 = vld [vmem:[%s1 + $0x318] sm:$0xff]
        %v450 = vld [vmem:[%s1 + $0x320] sm:$0xff]
        %v451 = vld [vmem:[%s1 + $0x328] sm:$0xff]
        %v452 = vld [vmem:[%s1 + $0x330] sm:$0xff]
        %v453 = vld [vmem:[%s1 + $0x338] sm:$0xff]
        %v454 = vld [vmem:[%s1 + $0x340] sm:$0xff]
        %v455 = vld [vmem:[%s1 + $0x348] sm:$0xff]
        %v456 = vld [vmem:[%s1 + $0x350] sm:$0xff]
        %v457 = vld [vmem:[%s1 + $0x358] sm:$0xff]
        %v458 = vld [vmem:[%s1 + $0x360] sm:$0xff]
        %v459 = vld [vmem:[%s1 + $0x368] sm:$0xff]
        %v460 = vld [vmem:[%s1 + $0x370] sm:$0xff]
        %v461 = vld [vmem:[%s1 + $0x378] sm:$0xff]
        %v462 = vld [vmem:[%s1 + $0x380] sm:$0xff]
        %v463 = vld [vmem:[%s1 + $0x388] sm:$0xff]
        %v464 = vld [vmem:[%s1 + $0x390] sm:$0xff]
        %v465 = vld [vmem:[%s1 + $0x398] sm:$0xff]
        %v466 = vld [vmem:[%s1 + $0x3a0] sm:$0xff]
        %v467 = vld [vmem:[%s1 + $0x3a8] sm:$0xff]
        %v468 = vld [vmem:[%s1 + $0x3b0] sm:$0xff]
        %v469 = vld [vmem:[%s1 + $0x3b8] sm:$0xff]
        %v470 = vld [vmem:[%s1 + $0x3c0] sm:$0xff]
        %v471 = vld [vmem:[%s1 + $0x3c8] sm:$0xff]
        %v472 = vld [vmem:[%s1 + $0x3d0] sm:$0xff]
        %v473 = vld [vmem:[%s1 + $0x3d8] sm:$0xff]
        %v474 = vld [vmem:[%s1 + $0x3e0] sm:$0xff]
        %v475 = vld [vmem:[%s1 + $0x3e8] sm:$0xff]
        %v476 = vld [vmem:[%s1 + $0x3f0] sm:$0xff]
        %v477 = vld [vmem:[%s1 + $0x3f8] sm:$0xff]
        %v478 = vld [vmem:[%s1 + $0x400] sm:$0xff]
        %v479 = vld [vmem:[%s1 + $0x408] sm:$0xff]
        %v480 = vld [vmem:[%s1 + $0x410] sm:$0xff]
        %v481 = vld [vmem:[%s1 + $0x418] sm:$0xff]
        %v482 = vld [vmem:[%s1 + $0x420] sm:$0xff]
        %v483 = vld [vmem:[%s1 + $0x428] sm:$0xff]
        %v484 = vld [vmem:[%s1 + $0x430] sm:$0xff]
        %v485 = vld [vmem:[%s1 + $0x438] sm:$0xff]
        %v486 = vld [vmem:[%s1 + $0x440] sm:$0xff]
        %v487 = vld [vmem:[%s1 + $0x448] sm:$0xff]
        %v488 = vld [vmem:[%s1 + $0x450] sm:$0xff]
        %v489 = vld [vmem:[%s1 + $0x458] sm:$0xff]
        %v490 = vld [vmem:[%s1 + $0x460] sm:$0xff]
        %v491 = vld [vmem:[%s1 + $0x468] sm:$0xff]
        %v492 = vld [vmem:[%s1 + $0x470] sm:$0xff]
        %v493 = vld [vmem:[%s1 + $0x478] sm:$0xff]
        %v494 = vld [vmem:[%s1 + $0x480] sm:$0xff]
        %v495 = vld [vmem:[%s1 + $0x488] sm:$0xff]
        %v496 = vld [vmem:[%s1 + $0x490] sm:$0xff]
        %v497 = vld [vmem:[%s1 + $0x498] sm:$0xff]
        %v498 = vld [vmem:[%s1 + $0x4a0] sm:$0xff]
        %v499 = vld [vmem:[%s1 + $0x4a8] sm:$0xff]
        %v500 = vld [vmem:[%s1 + $0x4b0] sm:$0xff]
        %v501 = vld [vmem:[%s1 + $0x4b8] sm:$0xff]
        %v502 = vld [vmem:[%s1 + $0x4c0] sm:$0xff]
        %v503 = vld [vmem:[%s1 + $0x4c8] sm:$0xff]
        %v504 = vld [vmem:[%s1 + $0x4d0] sm:$0xff]
        %v505 = vld [vmem:[%s1 + $0x4d8] sm:$0xff]
        %v506 = vld [vmem:[%s1 + $0x4e0] sm:$0xff]
        %v507 = vld [vmem:[%s1 + $0x4e8] sm:$0xff]
        %v508 = vld [vmem:[%s1 + $0x4f0] sm:$0xff]
        %v509 = vld [vmem:[%s1 + $0x4f8] sm:$0xff]
        %v510 = vld [vmem:[%s1 + $0x500] sm:$0xff]
        %v511 = vld [vmem:[%s1 + $0x508] sm:$0xff]
        %v512 = vld [vmem:[%s1 + $0x510] sm:$0xff]
        %v513 = vld [vmem:[%s1 + $0x518] sm:$0xff]
        %v514 = vld [vmem:[%s1 + $0x520] sm:$0xff]
        %v515 = vld [vmem:[%s1 + $0x528] sm:$0xff]
        %v516 = vld [vmem:[%s1 + $0x530] sm:$0xff]
        %v517 = vld [vmem:[%s1 + $0x538] sm:$0xff]
        %v518 = vld [vmem:[%s1 + $0x540] sm:$0xff]
        %v519 = vld [vmem:[%s1 + $0x548] sm:$0xff]
        %v520 = vld [vmem:[%s1 + $0x550] sm:$0xff]
        %v521 = vld [vmem:[%s1 + $0x558] sm:$0xff]
        %v522 = vld [vmem:[%s1 + $0x560] sm:$0xff]
        %v523 = vld [vmem:[%s1 + $0x568] sm:$0xff]
        %v524 = vld [vmem:[%s1 + $0x570] sm:$0xff]
        %v525 = vld [vmem:[%s1 + $0x578] sm:$0xff]
        %v526 = vld [vmem:[%s1 + $0x580] sm:$0xff]
        %v527 = vld [vmem:[%s1 + $0x588] sm:$0xff]
        %v528 = vld [vmem:[%s1 + $0x590] sm:$0xff]
        %v529 = vld [vmem:[%s1 + $0x598] sm:$0xff]
        %v530 = vld [vmem:[%s1 + $0x5a0] sm:$0xff]
        %v531 = vld [vmem:[%s1 + $0x5a8] sm:$0xff]
        %v532 = vld [vmem:[%s1 + $0x5b0] sm:$0xff]
        %v533 = vld [vmem:[%s1 + $0x5b8] sm:$0xff]
        %v534 = vld [vmem:[%s1 + $0x5c0] sm:$0xff]
        %v535 = vld [vmem:[%s1 + $0x5c8] sm:$0xff]
        %v536 = vld [vmem:[%s1 + $0x5d0] sm:$0xff]
        %v537 = vld [vmem:[%s1 + $0x5d8] sm:$0xff]
        %v538 = vld [vmem:[%s1 + $0x5e0] sm:$0xff]
        %v539 = vld [vmem:[%s1 + $0x5e8] sm:$0xff]
        %v540 = vld [vmem:[%s1 + $0x5f0] sm:$0xff]
        %v541 = vld [vmem:[%s1 + $0x5f8] sm:$0xff]
        %v542 = vld [vmem:[%s1 + $0x600] sm:$0xff]
        %v543 = vld [vmem:[%s1 + $0x608] sm:$0xff]
        %v544 = vld [vmem:[%s1 + $0x610] sm:$0xff]
        %v545 = vld [vmem:[%s1 + $0x618] sm:$0xff]
        %v547 = vperm.slane %v347, 0
        %v548 = vperm.slane %v347, 1
        %v549 = vperm.slane %v347, 2
        %v550 = vperm.slane %v347, 3
        %v751 = vunpack.c.l.b16 %v350
        %v752 = vunpack.c.h.b16 %v350
        %v753 = vunpack.c.l.b16 %v351
        %v754 = vunpack.c.h.b16 %v351
        %v755 = vunpack.c.l.b16 %v352
        %v756 = vunpack.c.h.b16 %v352
        %v757 = vunpack.c.l.b16 %v353
        %v758 = vunpack.c.h.b16 %v353
        %v759 = vunpack.c.l.b16 %v354
        %v760 = vunpack.c.h.b16 %v354
        %v761 = vunpack.c.l.b16 %v355
        %v762 = vunpack.c.h.b16 %v355
        %v763 = vunpack.c.l.b16 %v356
        %v764 = vunpack.c.h.b16 %v356
        %v765 = vunpack.c.l.b16 %v357
        %v766 = vunpack.c.h.b16 %v357
        %v767 = vunpack.c.l.b16 %v358
        %v768 = vunpack.c.h.b16 %v358
        %v769 = vunpack.c.l.b16 %v359
        %v770 = vunpack.c.h.b16 %v359
        %v771 = vunpack.c.l.b16 %v360
        %v772 = vunpack.c.h.b16 %v360
        %v773 = vunpack.c.l.b16 %v361
        %v774 = vunpack.c.h.b16 %v361
        %v775 = vunpack.c.l.b16 %v362
        %v776 = vunpack.c.h.b16 %v362
        %v777 = vunpack.c.l.b16 %v363
        %v778 = vunpack.c.h.b16 %v363
        %v779 = vunpack.c.l.b16 %v364
        %v780 = vunpack.c.h.b16 %v364
        %v781 = vunpack.c.l.b16 %v365
        %v782 = vunpack.c.h.b16 %v365
        %v783 = vunpack.c.l.b16 %v366
        %v784 = vunpack.c.h.b16 %v366
        %v785 = vunpack.c.l.b16 %v367
        %v786 = vunpack.c.h.b16 %v367
        %v787 = vunpack.c.l.b16 %v368
        %v788 = vunpack.c.h.b16 %v368
        %v789 = vunpack.c.l.b16 %v369
        %v790 = vunpack.c.h.b16 %v369
        %v791 = vunpack.c.l.b16 %v370
        %v792 = vunpack.c.h.b16 %v370
        %v793 = vunpack.c.l.b16 %v371
        %v794 = vunpack.c.h.b16 %v371
        %v795 = vunpack.c.l.b16 %v372
        %v796 = vunpack.c.h.b16 %v372
        %v797 = vunpack.c.l.b16 %v373
        %v798 = vunpack.c.h.b16 %v373
        %v799 = vunpack.c.l.b16 %v374
        %v800 = vunpack.c.h.b16 %v374
        %v801 = vunpack.c.l.b16 %v375
        %v802 = vunpack.c.h.b16 %v375
        %v803 = vunpack.c.l.b16 %v376
        %v804 = vunpack.c.h.b16 %v376
        %v805 = vunpack.c.l.b16 %v377
        %v806 = vunpack.c.h.b16 %v377
        %v807 = vunpack.c.l.b16 %v378
        %v808 = vunpack.c.h.b16 %v378
        %v809 = vunpack.c.l.b16 %v379
        %v810 = vunpack.c.h.b16 %v379
        %v811 = vunpack.c.l.b16 %v380
        %v812 = vunpack.c.h.b16 %v380
        %v813 = vunpack.c.l.b16 %v381
        %v814 = vunpack.c.h.b16 %v381
        %v815 = vunpack.c.l.b16 %v382
        %v816 = vunpack.c.h.b16 %v382
        %v817 = vunpack.c.l.b16 %v383
        %v818 = vunpack.c.h.b16 %v383
        %v819 = vunpack.c.l.b16 %v384
        %v820 = vunpack.c.h.b16 %v384
        %v821 = vunpack.c.l.b16 %v385
        %v822 = vunpack.c.h.b16 %v385
        %v823 = vunpack.c.l.b16 %v386
        %v824 = vunpack.c.h.b16 %v386
        %v825 = vunpack.c.l.b16 %v387
        %v826 = vunpack.c.h.b16 %v387
        %v827 = vunpack.c.l.b16 %v388
        %v828 = vunpack.c.h.b16 %v388
        %v829 = vunpack.c.l.b16 %v389
        %v830 = vunpack.c.h.b16 %v389
        %v831 = vunpack.c.l.b16 %v390
        %v832 = vunpack.c.h.b16 %v390
        %v833 = vunpack.c.l.b16 %v391
        %v834 = vunpack.c.h.b16 %v391
        %v835 = vunpack.c.l.b16 %v392
        %v836 = vunpack.c.h.b16 %v392
        %v837 = vunpack.c.l.b16 %v393
        %v838 = vunpack.c.h.b16 %v393
        %v839 = vunpack.c.l.b16 %v394
        %v840 = vunpack.c.h.b16 %v394
        %v841 = vunpack.c.l.b16 %v395
        %v842 = vunpack.c.h.b16 %v395
        %v843 = vunpack.c.l.b16 %v396
        %v844 = vunpack.c.h.b16 %v396
        %v845 = vunpack.c.l.b16 %v397
        %v846 = vunpack.c.h.b16 %v397
        %v847 = vunpack.c.l.b16 %v398
        %v848 = vunpack.c.h.b16 %v398
        %v849 = vunpack.c.l.b16 %v399
        %v850 = vunpack.c.h.b16 %v399
        %v851 = vunpack.c.l.b16 %v400
        %v852 = vunpack.c.h.b16 %v400
        %v853 = vunpack.c.l.b16 %v401
        %v854 = vunpack.c.h.b16 %v401
        %v855 = vunpack.c.l.b16 %v402
        %v856 = vunpack.c.h.b16 %v402
        %v857 = vunpack.c.l.b16 %v403
        %v858 = vunpack.c.h.b16 %v403
        %v859 = vunpack.c.l.b16 %v404
        %v860 = vunpack.c.h.b16 %v404
        %v861 = vunpack.c.l.b16 %v405
        %v862 = vunpack.c.h.b16 %v405
        %v863 = vunpack.c.l.b16 %v406
        %v864 = vunpack.c.h.b16 %v406
        %v865 = vunpack.c.l.b16 %v407
        %v866 = vunpack.c.h.b16 %v407
        %v867 = vunpack.c.l.b16 %v408
        %v868 = vunpack.c.h.b16 %v408
        %v869 = vunpack.c.l.b16 %v409
        %v870 = vunpack.c.h.b16 %v409
        %v871 = vunpack.c.l.b16 %v410
        %v872 = vunpack.c.h.b16 %v410
        %v873 = vunpack.c.l.b16 %v411
        %v874 = vunpack.c.h.b16 %v411
        %v875 = vunpack.c.l.b16 %v412
        %v876 = vunpack.c.h.b16 %v412
        %v877 = vunpack.c.l.b16 %v413
        %v878 = vunpack.c.h.b16 %v413
        %v879 = vunpack.c.l.b16 %v414
        %v880 = vunpack.c.h.b16 %v414
        %v881 = vunpack.c.l.b16 %v415
        %v882 = vunpack.c.h.b16 %v415
        %v883 = vunpack.c.l.b16 %v416
        %v884 = vunpack.c.h.b16 %v416
        %v885 = vunpack.c.l.b16 %v417
        %v886 = vunpack.c.h.b16 %v417
        %v887 = vunpack.c.l.b16 %v418
        %v888 = vunpack.c.h.b16 %v418
        %v889 = vunpack.c.l.b16 %v419
        %v890 = vunpack.c.h.b16 %v419
        %v891 = vunpack.c.l.b16 %v420
        %v892 = vunpack.c.h.b16 %v420
        %v893 = vunpack.c.l.b16 %v421
        %v894 = vunpack.c.h.b16 %v421
        %v895 = vunpack.c.l.b16 %v422
        %v896 = vunpack.c.h.b16 %v422
        %v897 = vunpack.c.l.b16 %v423
        %v898 = vunpack.c.h.b16 %v423
        %v899 = vunpack.c.l.b16 %v424
        %v900 = vunpack.c.h.b16 %v424
        %v901 = vunpack.c.l.b16 %v425
        %v902 = vunpack.c.h.b16 %v425
        %v903 = vunpack.c.l.b16 %v426
        %v904 = vunpack.c.h.b16 %v426
        %v905 = vunpack.c.l.b16 %v427
        %v906 = vunpack.c.h.b16 %v427
        %v907 = vunpack.c.l.b16 %v428
        %v908 = vunpack.c.h.b16 %v428
        %v909 = vunpack.c.l.b16 %v429
        %v910 = vunpack.c.h.b16 %v429
        %v911 = vunpack.c.l.b16 %v430
        %v912 = vunpack.c.h.b16 %v430
        %v913 = vunpack.c.l.b16 %v431
        %v914 = vunpack.c.h.b16 %v431
        %v915 = vunpack.c.l.b16 %v432
        %v916 = vunpack.c.h.b16 %v432
        %v917 = vunpack.c.l.b16 %v433
        %v918 = vunpack.c.h.b16 %v433
        %v919 = vunpack.c.l.b16 %v434
        %v920 = vunpack.c.h.b16 %v434
        %v921 = vunpack.c.l.b16 %v435
        %v922 = vunpack.c.h.b16 %v435
        %v923 = vunpack.c.l.b16 %v436
        %v924 = vunpack.c.h.b16 %v436
        %v925 = vunpack.c.l.b16 %v437
        %v926 = vunpack.c.h.b16 %v437
        %v927 = vunpack.c.l.b16 %v438
        %v928 = vunpack.c.h.b16 %v438
        %v929 = vunpack.c.l.b16 %v439
        %v930 = vunpack.c.h.b16 %v439
        %v931 = vunpack.c.l.b16 %v440
        %v932 = vunpack.c.h.b16 %v440
        %v933 = vunpack.c.l.b16 %v441
        %v934 = vunpack.c.h.b16 %v441
        %v935 = vunpack.c.l.b16 %v442
        %v936 = vunpack.c.h.b16 %v442
        %v937 = vunpack.c.l.b16 %v443
        %v938 = vunpack.c.h.b16 %v443
        %v939 = vunpack.c.l.b16 %v444
        %v940 = vunpack.c.h.b16 %v444
        %v941 = vunpack.c.l.b16 %v445
        %v942 = vunpack.c.h.b16 %v445
        %v943 = vunpack.c.l.b16 %v446
        %v944 = vunpack.c.h.b16 %v446
        %v945 = vunpack.c.l.b16 %v447
        %v946 = vunpack.c.h.b16 %v447
        %v947 = vunpack.c.l.b16 %v448
        %v948 = vunpack.c.h.b16 %v448
        %v949 = vunpack.c.l.b16 %v449
        %v950 = vunpack.c.h.b16 %v449
        %v951 = vunpack.c.l.b16 %v450
        %v952 = vunpack.c.h.b16 %v450
        %v953 = vunpack.c.l.b16 %v451
        %v954 = vunpack.c.h.b16 %v451
        %v955 = vunpack.c.l.b16 %v452
        %v956 = vunpack.c.h.b16 %v452
        %v957 = vunpack.c.l.b16 %v453
        %v958 = vunpack.c.h.b16 %v453
        %v959 = vunpack.c.l.b16 %v454
        %v960 = vunpack.c.h.b16 %v454
        %v961 = vunpack.c.l.b16 %v455
        %v962 = vunpack.c.h.b16 %v455
        %v963 = vunpack.c.l.b16 %v456
        %v964 = vunpack.c.h.b16 %v456
        %v965 = vunpack.c.l.b16 %v457
        %v966 = vunpack.c.h.b16 %v457
        %v967 = vunpack.c.l.b16 %v458
        %v968 = vunpack.c.h.b16 %v458
        %v969 = vunpack.c.l.b16 %v459
        %v970 = vunpack.c.h.b16 %v459
        %v971 = vunpack.c.l.b16 %v460
        %v972 = vunpack.c.h.b16 %v460
        %v973 = vunpack.c.l.b16 %v461
        %v974 = vunpack.c.h.b16 %v461
        %v975 = vunpack.c.l.b16 %v462
        %v976 = vunpack.c.h.b16 %v462
        %v977 = vunpack.c.l.b16 %v463
        %v978 = vunpack.c.h.b16 %v463
        %v979 = vunpack.c.l.b16 %v464
        %v980 = vunpack.c.h.b16 %v464
        %v981 = vunpack.c.l.b16 %v465
        %v982 = vunpack.c.h.b16 %v465
        %v983 = vunpack.c.l.b16 %v466
        %v984 = vunpack.c.h.b16 %v466
        %v985 = vunpack.c.l.b16 %v467
        %v986 = vunpack.c.h.b16 %v467
        %v987 = vunpack.c.l.b16 %v468
        %v988 = vunpack.c.h.b16 %v468
        %v989 = vunpack.c.l.b16 %v469
        %v990 = vunpack.c.h.b16 %v469
        %v991 = vunpack.c.l.b16 %v470
        %v992 = vunpack.c.h.b16 %v470
        %v993 = vunpack.c.l.b16 %v471
        %v994 = vunpack.c.h.b16 %v471
        %v995 = vunpack.c.l.b16 %v472
        %v996 = vunpack.c.h.b16 %v472
        %v997 = vunpack.c.l.b16 %v473
        %v998 = vunpack.c.h.b16 %v473
        %v999 = vunpack.c.l.b16 %v474
        %v1000 = vunpack.c.h.b16 %v474
        %v1001 = vunpack.c.l.b16 %v475
        %v1002 = vunpack.c.h.b16 %v475
        %v1003 = vunpack.c.l.b16 %v476
        %v1004 = vunpack.c.h.b16 %v476
        %v1005 = vunpack.c.l.b16 %v477
        %v1006 = vunpack.c.h.b16 %v477
        %v1007 = vunpack.c.l.b16 %v478
        %v1008 = vunpack.c.h.b16 %v478
        %v1009 = vunpack.c.l.b16 %v479
        %v1010 = vunpack.c.h.b16 %v479
        %v1011 = vunpack.c.l.b16 %v480
        %v1012 = vunpack.c.h.b16 %v480
        %v1013 = vunpack.c.l.b16 %v481
        %v1014 = vunpack.c.h.b16 %v481
        %v1015 = vunpack.c.l.b16 %v482
        %v1016 = vunpack.c.h.b16 %v482
        %v1017 = vunpack.c.l.b16 %v483
        %v1018 = vunpack.c.h.b16 %v483
        %v1019 = vunpack.c.l.b16 %v484
        %v1020 = vunpack.c.h.b16 %v484
        %v1021 = vunpack.c.l.b16 %v485
        %v1022 = vunpack.c.h.b16 %v485
        %v1023 = vunpack.c.l.b16 %v486
        %v1024 = vunpack.c.h.b16 %v486
        %v1025 = vunpack.c.l.b16 %v487
        %v1026 = vunpack.c.h.b16 %v487
        %v1027 = vunpack.c.l.b16 %v488
        %v1028 = vunpack.c.h.b16 %v488
        %v1029 = vunpack.c.l.b16 %v489
        %v1030 = vunpack.c.h.b16 %v489
        %v1031 = vunpack.c.l.b16 %v490
        %v1032 = vunpack.c.h.b16 %v490
        %v1033 = vunpack.c.l.b16 %v491
        %v1034 = vunpack.c.h.b16 %v491
        %v1035 = vunpack.c.l.b16 %v492
        %v1036 = vunpack.c.h.b16 %v492
        %v1037 = vunpack.c.l.b16 %v493
        %v1038 = vunpack.c.h.b16 %v493
        %v1039 = vunpack.c.l.b16 %v494
        %v1040 = vunpack.c.h.b16 %v494
        %v1041 = vunpack.c.l.b16 %v495
        %v1042 = vunpack.c.h.b16 %v495
        %v1043 = vunpack.c.l.b16 %v496
        %v1044 = vunpack.c.h.b16 %v496
        %v1045 = vunpack.c.l.b16 %v497
        %v1046 = vunpack.c.h.b16 %v497
        %v1047 = vunpack.c.l.b16 %v498
        %v1048 = vunpack.c.h.b16 %v498
        %v1049 = vunpack.c.l.b16 %v499
        %v1050 = vunpack.c.h.b16 %v499
        %v1051 = vunpack.c.l.b16 %v500
        %v1052 = vunpack.c.h.b16 %v500
        %v1053 = vunpack.c.l.b16 %v501
        %v1054 = vunpack.c.h.b16 %v501
        %v1055 = vunpack.c.l.b16 %v502
        %v1056 = vunpack.c.h.b16 %v502
        %v1057 = vunpack.c.l.b16 %v503
        %v1058 = vunpack.c.h.b16 %v503
        %v1059 = vunpack.c.l.b16 %v504
        %v1060 = vunpack.c.h.b16 %v504
        %v1061 = vunpack.c.l.b16 %v505
        %v1062 = vunpack.c.h.b16 %v505
        %v1063 = vunpack.c.l.b16 %v506
        %v1064 = vunpack.c.h.b16 %v506
        %v1065 = vunpack.c.l.b16 %v507
        %v1066 = vunpack.c.h.b16 %v507
        %v1067 = vunpack.c.l.b16 %v508
        %v1068 = vunpack.c.h.b16 %v508
        %v1069 = vunpack.c.l.b16 %v509
        %v1070 = vunpack.c.h.b16 %v509
        %v1071 = vunpack.c.l.b16 %v510
        %v1072 = vunpack.c.h.b16 %v510
        %v1073 = vunpack.c.l.b16 %v511
        %v1074 = vunpack.c.h.b16 %v511
        %v1075 = vunpack.c.l.b16 %v512
        %v1076 = vunpack.c.h.b16 %v512
        %v1077 = vunpack.c.l.b16 %v513
        %v1078 = vunpack.c.h.b16 %v513
        %v1079 = vunpack.c.l.b16 %v514
        %v1080 = vunpack.c.h.b16 %v514
        %v1081 = vunpack.c.l.b16 %v515
        %v1082 = vunpack.c.h.b16 %v515
        %v1083 = vunpack.c.l.b16 %v516
        %v1084 = vunpack.c.h.b16 %v516
        %v1085 = vunpack.c.l.b16 %v517
        %v1086 = vunpack.c.h.b16 %v517
        %v1087 = vunpack.c.l.b16 %v518
        %v1088 = vunpack.c.h.b16 %v518
        %v1089 = vunpack.c.l.b16 %v519
        %v1090 = vunpack.c.h.b16 %v519
        %v1091 = vunpack.c.l.b16 %v520
        %v1092 = vunpack.c.h.b16 %v520
        %v1093 = vunpack.c.l.b16 %v521
        %v1094 = vunpack.c.h.b16 %v521
        %v1095 = vunpack.c.l.b16 %v522
        %v1096 = vunpack.c.h.b16 %v522
        %v1097 = vunpack.c.l.b16 %v523
        %v1098 = vunpack.c.h.b16 %v523
        %v1099 = vunpack.c.l.b16 %v524
        %v1100 = vunpack.c.h.b16 %v524
        %v1101 = vunpack.c.l.b16 %v525
        %v1102 = vunpack.c.h.b16 %v525
        %v1103 = vunpack.c.l.b16 %v526
        %v1104 = vunpack.c.h.b16 %v526
        %v1105 = vunpack.c.l.b16 %v527
        %v1106 = vunpack.c.h.b16 %v527
        %v1107 = vunpack.c.l.b16 %v528
        %v1108 = vunpack.c.h.b16 %v528
        %v1109 = vunpack.c.l.b16 %v529
        %v1110 = vunpack.c.h.b16 %v529
        %v1111 = vunpack.c.l.b16 %v530
        %v1112 = vunpack.c.h.b16 %v530
        %v1113 = vunpack.c.l.b16 %v531
        %v1114 = vunpack.c.h.b16 %v531
        %v1115 = vunpack.c.l.b16 %v532
        %v1116 = vunpack.c.h.b16 %v532
        %v1117 = vunpack.c.l.b16 %v533
        %v1118 = vunpack.c.h.b16 %v533
        %v1119 = vunpack.c.l.b16 %v534
        %v1120 = vunpack.c.h.b16 %v534
        %v1121 = vunpack.c.l.b16 %v535
        %v1122 = vunpack.c.h.b16 %v535
        %v1123 = vunpack.c.l.b16 %v536
        %v1124 = vunpack.c.h.b16 %v536
        %v1125 = vunpack.c.l.b16 %v537
        %v1126 = vunpack.c.h.b16 %v537
        %v1127 = vunpack.c.l.b16 %v538
        %v1128 = vunpack.c.h.b16 %v538
        %v1129 = vunpack.c.l.b16 %v539
        %v1130 = vunpack.c.h.b16 %v539
        %v1131 = vunpack.c.l.b16 %v540
        %v1132 = vunpack.c.h.b16 %v540
        %v1133 = vunpack.c.l.b16 %v541
        %v1134 = vunpack.c.h.b16 %v541
        %v1135 = vunpack.c.l.b16 %v542
        %v1136 = vunpack.c.h.b16 %v542
        %v1137 = vunpack.c.l.b16 %v543
        %v1138 = vunpack.c.h.b16 %v543
        %v1139 = vunpack.c.l.b16 %v544
        %v1140 = vunpack.c.h.b16 %v544
        %v1141 = vunpack.c.l.b16 %v545
        %v1142 = vunpack.c.h.b16 %v545
        %v1143 = vpack.c.b16 %v755, %v751
        %v1144 = vpack.c.b16 %v756, %v752
        %v1145 = vpack.c.b16 %v757, %v753
        %v1146 = vpack.c.b16 %v758, %v754
        %v1147 = vpack.c.b16 %v763, %v759
        %v1148 = vpack.c.b16 %v764, %v760
        %v1149 = vpack.c.b16 %v765, %v761
        %v1150 = vpack.c.b16 %v766, %v762
        %v1151 = vpack.c.b16 %v771, %v767
        %v1152 = vpack.c.b16 %v772, %v768
        %v1153 = vpack.c.b16 %v773, %v769
        %v1154 = vpack.c.b16 %v774, %v770
        %v1155 = vpack.c.b16 %v779, %v775
        %v1156 = vpack.c.b16 %v780, %v776
        %v1157 = vpack.c.b16 %v781, %v777
        %v1158 = vpack.c.b16 %v782, %v778
        %v1159 = vpack.c.b16 %v787, %v783
        %v1160 = vpack.c.b16 %v788, %v784
        %v1161 = vpack.c.b16 %v789, %v785
        %v1162 = vpack.c.b16 %v790, %v786
        %v1163 = vpack.c.b16 %v795, %v791
        %v1164 = vpack.c.b16 %v796, %v792
        %v1165 = vpack.c.b16 %v797, %v793
        %v1166 = vpack.c.b16 %v798, %v794
        %v1167 = vpack.c.b16 %v803, %v799
        %v1168 = vpack.c.b16 %v804, %v800
        %v1169 = vpack.c.b16 %v805, %v801
        %v1170 = vpack.c.b16 %v806, %v802
        %v1171 = vpack.c.b16 %v811, %v807
        %v1172 = vpack.c.b16 %v812, %v808
        %v1173 = vpack.c.b16 %v813, %v809
        %v1174 = vpack.c.b16 %v814, %v810
        %v1175 = vpack.c.b16 %v819, %v815
        %v1176 = vpack.c.b16 %v820, %v816
        %v1177 = vpack.c.b16 %v821, %v817
        %v1178 = vpack.c.b16 %v822, %v818
        %v1179 = vpack.c.b16 %v827, %v823
        %v1180 = vpack.c.b16 %v828, %v824
        %v1181 = vpack.c.b16 %v829, %v825
        %v1182 = vpack.c.b16 %v830, %v826
        %v1183 = vpack.c.b16 %v835, %v831
        %v1184 = vpack.c.b16 %v836, %v832
        %v1185 = vpack.c.b16 %v837, %v833
        %v1186 = vpack.c.b16 %v838, %v834
        %v1187 = vpack.c.b16 %v843, %v839
        %v1188 = vpack.c.b16 %v844, %v840
        %v1189 = vpack.c.b16 %v845, %v841
        %v1190 = vpack.c.b16 %v846, %v842
        %v1191 = vpack.c.b16 %v851, %v847
        %v1192 = vpack.c.b16 %v852, %v848
        %v1193 = vpack.c.b16 %v853, %v849
        %v1194 = vpack.c.b16 %v854, %v850
        %v1195 = vpack.c.b16 %v859, %v855
        %v1196 = vpack.c.b16 %v860, %v856
        %v1197 = vpack.c.b16 %v861, %v857
        %v1198 = vpack.c.b16 %v862, %v858
        %v1199 = vpack.c.b16 %v867, %v863
        %v1200 = vpack.c.b16 %v868, %v864
        %v1201 = vpack.c.b16 %v869, %v865
        %v1202 = vpack.c.b16 %v870, %v866
        %v1203 = vpack.c.b16 %v875, %v871
        %v1204 = vpack.c.b16 %v876, %v872
        %v1205 = vpack.c.b16 %v877, %v873
        %v1206 = vpack.c.b16 %v878, %v874
        %v1207 = vpack.c.b16 %v883, %v879
        %v1208 = vpack.c.b16 %v884, %v880
        %v1209 = vpack.c.b16 %v885, %v881
        %v1210 = vpack.c.b16 %v886, %v882
        %v1211 = vpack.c.b16 %v891, %v887
        %v1212 = vpack.c.b16 %v892, %v888
        %v1213 = vpack.c.b16 %v893, %v889
        %v1214 = vpack.c.b16 %v894, %v890
        %v1215 = vpack.c.b16 %v899, %v895
        %v1216 = vpack.c.b16 %v900, %v896
        %v1217 = vpack.c.b16 %v901, %v897
        %v1218 = vpack.c.b16 %v902, %v898
        %v1219 = vpack.c.b16 %v907, %v903
        %v1220 = vpack.c.b16 %v908, %v904
        %v1221 = vpack.c.b16 %v909, %v905
        %v1222 = vpack.c.b16 %v910, %v906
        %v1223 = vpack.c.b16 %v915, %v911
        %v1224 = vpack.c.b16 %v916, %v912
        %v1225 = vpack.c.b16 %v917, %v913
        %v1226 = vpack.c.b16 %v918, %v914
        %v1227 = vpack.c.b16 %v923, %v919
        %v1228 = vpack.c.b16 %v924, %v920
        %v1229 = vpack.c.b16 %v925, %v921
        %v1230 = vpack.c.b16 %v926, %v922
        %v1231 = vpack.c.b16 %v931, %v927
        %v1232 = vpack.c.b16 %v932, %v928
        %v1233 = vpack.c.b16 %v933, %v929
        %v1234 = vpack.c.b16 %v934, %v930
        %v1235 = vpack.c.b16 %v939, %v935
        %v1236 = vpack.c.b16 %v940, %v936
        %v1237 = vpack.c.b16 %v941, %v937
        %v1238 = vpack.c.b16 %v942, %v938
        %v1239 = vpack.c.b16 %v947, %v943
        %v1240 = vpack.c.b16 %v948, %v944
        %v1241 = vpack.c.b16 %v949, %v945
        %v1242 = vpack.c.b16 %v950, %v946
        %v1243 = vpack.c.b16 %v955, %v951
        %v1244 = vpack.c.b16 %v956, %v952
        %v1245 = vpack.c.b16 %v957, %v953
        %v1246 = vpack.c.b16 %v958, %v954
        %v1247 = vpack.c.b16 %v963, %v959
        %v1248 = vpack.c.b16 %v964, %v960
        %v1249 = vpack.c.b16 %v965, %v961
        %v1250 = vpack.c.b16 %v966, %v962
        %v1251 = vpack.c.b16 %v971, %v967
        %v1252 = vpack.c.b16 %v972, %v968
        %v1253 = vpack.c.b16 %v973, %v969
        %v1254 = vpack.c.b16 %v974, %v970
        %v1255 = vpack.c.b16 %v979, %v975
        %v1256 = vpack.c.b16 %v980, %v976
        %v1257 = vpack.c.b16 %v981, %v977
        %v1258 = vpack.c.b16 %v982, %v978
        %v1259 = vpack.c.b16 %v987, %v983
        %v1260 = vpack.c.b16 %v988, %v984
        %v1261 = vpack.c.b16 %v989, %v985
        %v1262 = vpack.c.b16 %v990, %v986
        %v1263 = vpack.c.b16 %v995, %v991
        %v1264 = vpack.c.b16 %v996, %v992
        %v1265 = vpack.c.b16 %v997, %v993
        %v1266 = vpack.c.b16 %v998, %v994
        %v1267 = vpack.c.b16 %v1003, %v999
        %v1268 = vpack.c.b16 %v1004, %v1000
        %v1269 = vpack.c.b16 %v1005, %v1001
        %v1270 = vpack.c.b16 %v1006, %v1002
        %v1271 = vpack.c.b16 %v1011, %v1007
        %v1272 = vpack.c.b16 %v1012, %v1008
        %v1273 = vpack.c.b16 %v1013, %v1009
        %v1274 = vpack.c.b16 %v1014, %v1010
        %v1275 = vpack.c.b16 %v1019, %v1015
        %v1276 = vpack.c.b16 %v1020, %v1016
        %v1277 = vpack.c.b16 %v1021, %v1017
        %v1278 = vpack.c.b16 %v1022, %v1018
        %v1279 = vpack.c.b16 %v1027, %v1023
        %v1280 = vpack.c.b16 %v1028, %v1024
        %v1281 = vpack.c.b16 %v1029, %v1025
        %v1282 = vpack.c.b16 %v1030, %v1026
        %v1283 = vpack.c.b16 %v1035, %v1031
        %v1284 = vpack.c.b16 %v1036, %v1032
        %v1285 = vpack.c.b16 %v1037, %v1033
        %v1286 = vpack.c.b16 %v1038, %v1034
        %v1287 = vpack.c.b16 %v1043, %v1039
        %v1288 = vpack.c.b16 %v1044, %v1040
        %v1289 = vpack.c.b16 %v1045, %v1041
        %v1290 = vpack.c.b16 %v1046, %v1042
        %v1291 = vpack.c.b16 %v1051, %v1047
        %v1292 = vpack.c.b16 %v1052, %v1048
        %v1293 = vpack.c.b16 %v1053, %v1049
        %v1294 = vpack.c.b16 %v1054, %v1050
        %v1295 = vpack.c.b16 %v1059, %v1055
        %v1296 = vpack.c.b16 %v1060, %v1056
        %v1297 = vpack.c.b16 %v1061, %v1057
        %v1298 = vpack.c.b16 %v1062, %v1058
        %v1299 = vpack.c.b16 %v1067, %v1063
        %v1300 = vpack.c.b16 %v1068, %v1064
        %v1301 = vpack.c.b16 %v1069, %v1065
        %v1302 = vpack.c.b16 %v1070, %v1066
        %v1303 = vpack.c.b16 %v1075, %v1071
        %v1304 = vpack.c.b16 %v1076, %v1072
        %v1305 = vpack.c.b16 %v1077, %v1073
        %v1306 = vpack.c.b16 %v1078, %v1074
        %v1307 = vpack.c.b16 %v1083, %v1079
        %v1308 = vpack.c.b16 %v1084, %v1080
        %v1309 = vpack.c.b16 %v1085, %v1081
        %v1310 = vpack.c.b16 %v1086, %v1082
        %v1311 = vpack.c.b16 %v1091, %v1087
        %v1312 = vpack.c.b16 %v1092, %v1088
        %v1313 = vpack.c.b16 %v1093, %v1089
        %v1314 = vpack.c.b16 %v1094, %v1090
        %v1315 = vpack.c.b16 %v1099, %v1095
        %v1316 = vpack.c.b16 %v1100, %v1096
        %v1317 = vpack.c.b16 %v1101, %v1097
        %v1318 = vpack.c.b16 %v1102, %v1098
        %v1319 = vpack.c.b16 %v1107, %v1103
        %v1320 = vpack.c.b16 %v1108, %v1104
        %v1321 = vpack.c.b16 %v1109, %v1105
        %v1322 = vpack.c.b16 %v1110, %v1106
        %v1323 = vpack.c.b16 %v1115, %v1111
        %v1324 = vpack.c.b16 %v1116, %v1112
        %v1325 = vpack.c.b16 %v1117, %v1113
        %v1326 = vpack.c.b16 %v1118, %v1114
        %v1327 = vpack.c.b16 %v1123, %v1119
        %v1328 = vpack.c.b16 %v1124, %v1120
        %v1329 = vpack.c.b16 %v1125, %v1121
        %v1330 = vpack.c.b16 %v1126, %v1122
        %v1331 = vpack.c.b16 %v1131, %v1127
        %v1332 = vpack.c.b16 %v1132, %v1128
        %v1333 = vpack.c.b16 %v1133, %v1129
        %v1334 = vpack.c.b16 %v1134, %v1130
        %v1335 = vpack.c.b16 %v1139, %v1135
        %v1336 = vpack.c.b16 %v1140, %v1136
        %v1337 = vpack.c.b16 %v1141, %v1137
        %v1338 = vpack.c.b16 %v1142, %v1138
        %vm1535 = vcmask 130048
        %v1537 = vsel %vm1535, %v346, 0
        %1539 = vmatpush.bf16.msra.mxu0 %v1171
        %1540 = vmatpush.bf16.msra.mxu0 %v1167
        %1541 = vmatpush.bf16.msra.mxu0 %v1163
        %1542 = vmatpush.bf16.msra.mxu0 %v1159
        %1543 = vmatpush.bf16.msra.mxu0 %v1155
        %1544 = vmatpush.bf16.msra.mxu0 %v1151
        %1545 = vmatpush.bf16.msra.mxu0 %v1147
        %1546 = vmatpush.bf16.msra.mxu0 %v1143
        %1547 = vmatmul.bf16.gmra.mxu0 %v340
        %v1548 = vpop.f32.mrf.mxu0
        %v1549 = vadd.f32 %v547, %v1548
        %v1550 = vpop.f32.mrf.mxu0
        %v1551 = vadd.f32 %v547, %v1550
        %1552 = vdwg.mxu0
        %1553 = vmatpush.bf16.msra.mxu0 %v1203
        %1554 = vmatpush.bf16.msra.mxu0 %v1199
        %1555 = vmatpush.bf16.msra.mxu0 %v1195
        %1556 = vmatpush.bf16.msra.mxu0 %v1191
        %1557 = vmatpush.bf16.msra.mxu0 %v1187
        %1558 = vmatpush.bf16.msra.mxu0 %v1183
        %1559 = vmatpush.bf16.msra.mxu0 %v1179
        %1560 = vmatpush.bf16.msra.mxu0 %v1175
        %1561 = vmatmul.bf16.gmra.mxu0 %v341
        %v1562 = vpop.f32.mrf.mxu0
        %v1563 = vadd.f32 %v1549, %v1562
        %v1564 = vpop.f32.mrf.mxu0
        %v1565 = vadd.f32 %v1551, %v1564
        %1566 = vdwg.mxu0
        %1567 = vmatpush.bf16.msra.mxu0 %v1235
        %1568 = vmatpush.bf16.msra.mxu0 %v1231
        %1569 = vmatpush.bf16.msra.mxu0 %v1227
        %1570 = vmatpush.bf16.msra.mxu0 %v1223
        %1571 = vmatpush.bf16.msra.mxu0 %v1219
        %1572 = vmatpush.bf16.msra.mxu0 %v1215
        %1573 = vmatpush.bf16.msra.mxu0 %v1211
        %1574 = vmatpush.bf16.msra.mxu0 %v1207
        %1575 = vmatmul.bf16.gmra.mxu0 %v342
        %v1576 = vpop.f32.mrf.mxu0
        %v1577 = vadd.f32 %v1563, %v1576
        %v1578 = vpop.f32.mrf.mxu0
        %v1579 = vadd.f32 %v1565, %v1578
        %1580 = vdwg.mxu0
        %1581 = vmatpush.bf16.msra.mxu0 %v1267
        %1582 = vmatpush.bf16.msra.mxu0 %v1263
        %1583 = vmatpush.bf16.msra.mxu0 %v1259
        %1584 = vmatpush.bf16.msra.mxu0 %v1255
        %1585 = vmatpush.bf16.msra.mxu0 %v1251
        %1586 = vmatpush.bf16.msra.mxu0 %v1247
        %1587 = vmatpush.bf16.msra.mxu0 %v1243
        %1588 = vmatpush.bf16.msra.mxu0 %v1239
        %1589 = vmatmul.bf16.gmra.mxu0 %v343
        %v1590 = vpop.f32.mrf.mxu0
        %v1591 = vadd.f32 %v1577, %v1590
        %v1592 = vpop.f32.mrf.mxu0
        %v1593 = vadd.f32 %v1579, %v1592
        %1594 = vdwg.mxu0
        %1595 = vmatpush.bf16.msra.mxu0 %v1299
        %1596 = vmatpush.bf16.msra.mxu0 %v1295
        %1597 = vmatpush.bf16.msra.mxu0 %v1291
        %1598 = vmatpush.bf16.msra.mxu0 %v1287
        %1599 = vmatpush.bf16.msra.mxu0 %v1283
        %1600 = vmatpush.bf16.msra.mxu0 %v1279
        %1601 = vmatpush.bf16.msra.mxu0 %v1275
        %1602 = vmatpush.bf16.msra.mxu0 %v1271
        %1603 = vmatmul.bf16.gmra.mxu0 %v344
        %v1604 = vpop.f32.mrf.mxu0
        %v1605 = vadd.f32 %v1591, %v1604
        %v1606 = vpop.f32.mrf.mxu0
        %v1607 = vadd.f32 %v1593, %v1606
        %1608 = vdwg.mxu0
        %1609 = vmatpush.bf16.msra.mxu0 %v1331
        %1610 = vmatpush.bf16.msra.mxu0 %v1327
        %1611 = vmatpush.bf16.msra.mxu0 %v1323
        %1612 = vmatpush.bf16.msra.mxu0 %v1319
        %1613 = vmatpush.bf16.msra.mxu0 %v1315
        %1614 = vmatpush.bf16.msra.mxu0 %v1311
        %1615 = vmatpush.bf16.msra.mxu0 %v1307
        %1616 = vmatpush.bf16.msra.mxu0 %v1303
        %1617 = vmatmul.bf16.gmra.mxu0 %v345
        %v1618 = vpop.f32.mrf.mxu0
        %v1619 = vadd.f32 %v1605, %v1618
        %v1620 = vpop.f32.mrf.mxu0
        %v1621 = vadd.f32 %v1607, %v1620
        %1622 = vdwg.mxu0
        %1623 = vmatpush.bf16.msra.mxu0 0
        %1624 = vmatpush.bf16.msra.mxu0 0
        %1625 = vmatpush.bf16.msra.mxu0 0
        %1626 = vmatpush.bf16.msra.mxu0 0
        %1627 = vmatpush.bf16.msra.mxu0 0
        %1628 = vmatpush.bf16.msra.mxu0 0
        %1629 = vmatpush.bf16.msra.mxu0 0
        %1630 = vmatpush.bf16.msra.mxu0 %v1335
        %1631 = vmatmul.bf16.gmra.mxu0 %v1537
        %v1632 = vpop.f32.mrf.mxu0
        %v1633 = vadd.f32 %v1619, %v1632
        %v1634 = vpop.f32.mrf.mxu0
        %v1635 = vadd.f32 %v1621, %v1634
        %1636 = vdwg.mxu0
        %1637 = vmatpush.bf16.msra.mxu0 %v1172
        %1638 = vmatpush.bf16.msra.mxu0 %v1168
        %1639 = vmatpush.bf16.msra.mxu0 %v1164
        %1640 = vmatpush.bf16.msra.mxu0 %v1160
        %1641 = vmatpush.bf16.msra.mxu0 %v1156
        %1642 = vmatpush.bf16.msra.mxu0 %v1152
        %1643 = vmatpush.bf16.msra.mxu0 %v1148
        %1644 = vmatpush.bf16.msra.mxu0 %v1144
        %1645 = vmatmul.bf16.gmra.mxu0 %v340
        %v1646 = vpop.f32.mrf.mxu0
        %v1647 = vadd.f32 %v548, %v1646
        %v1648 = vpop.f32.mrf.mxu0
        %v1649 = vadd.f32 %v548, %v1648
        %1650 = vdwg.mxu0
        %1651 = vmatpush.bf16.msra.mxu0 %v1204
        %1652 = vmatpush.bf16.msra.mxu0 %v1200
        %1653 = vmatpush.bf16.msra.mxu0 %v1196
        %1654 = vmatpush.bf16.msra.mxu0 %v1192
        %1655 = vmatpush.bf16.msra.mxu0 %v1188
        %1656 = vmatpush.bf16.msra.mxu0 %v1184
        %1657 = vmatpush.bf16.msra.mxu0 %v1180
        %1658 = vmatpush.bf16.msra.mxu0 %v1176
        %1659 = vmatmul.bf16.gmra.mxu0 %v341
        %v1660 = vpop.f32.mrf.mxu0
        %v1661 = vadd.f32 %v1647, %v1660
        %v1662 = vpop.f32.mrf.mxu0
        %v1663 = vadd.f32 %v1649, %v1662
        %1664 = vdwg.mxu0
        %1665 = vmatpush.bf16.msra.mxu0 %v1236
        %1666 = vmatpush.bf16.msra.mxu0 %v1232
        %1667 = vmatpush.bf16.msra.mxu0 %v1228
        %1668 = vmatpush.bf16.msra.mxu0 %v1224
        %1669 = vmatpush.bf16.msra.mxu0 %v1220
        %1670 = vmatpush.bf16.msra.mxu0 %v1216
        %1671 = vmatpush.bf16.msra.mxu0 %v1212
        %1672 = vmatpush.bf16.msra.mxu0 %v1208
        %1673 = vmatmul.bf16.gmra.mxu0 %v342
        %v1674 = vpop.f32.mrf.mxu0
        %v1675 = vadd.f32 %v1661, %v1674
        %v1676 = vpop.f32.mrf.mxu0
        %v1677 = vadd.f32 %v1663, %v1676
        %1678 = vdwg.mxu0
        %1679 = vmatpush.bf16.msra.mxu0 %v1268
        %1680 = vmatpush.bf16.msra.mxu0 %v1264
        %1681 = vmatpush.bf16.msra.mxu0 %v1260
        %1682 = vmatpush.bf16.msra.mxu0 %v1256
        %1683 = vmatpush.bf16.msra.mxu0 %v1252
        %1684 = vmatpush.bf16.msra.mxu0 %v1248
        %1685 = vmatpush.bf16.msra.mxu0 %v1244
        %1686 = vmatpush.bf16.msra.mxu0 %v1240
        %1687 = vmatmul.bf16.gmra.mxu0 %v343
        %v1688 = vpop.f32.mrf.mxu0
        %v1689 = vadd.f32 %v1675, %v1688
        %v1690 = vpop.f32.mrf.mxu0
        %v1691 = vadd.f32 %v1677, %v1690
        %1692 = vdwg.mxu0
        %1693 = vmatpush.bf16.msra.mxu0 %v1300
        %1694 = vmatpush.bf16.msra.mxu0 %v1296
        %1695 = vmatpush.bf16.msra.mxu0 %v1292
        %1696 = vmatpush.bf16.msra.mxu0 %v1288
        %1697 = vmatpush.bf16.msra.mxu0 %v1284
        %1698 = vmatpush.bf16.msra.mxu0 %v1280
        %1699 = vmatpush.bf16.msra.mxu0 %v1276
        %1700 = vmatpush.bf16.msra.mxu0 %v1272
        %1701 = vmatmul.bf16.gmra.mxu0 %v344
        %v1702 = vpop.f32.mrf.mxu0
        %v1703 = vadd.f32 %v1689, %v1702
        %v1704 = vpop.f32.mrf.mxu0
        %v1705 = vadd.f32 %v1691, %v1704
        %1706 = vdwg.mxu0
        %1707 = vmatpush.bf16.msra.mxu0 %v1332
        %1708 = vmatpush.bf16.msra.mxu0 %v1328
        %1709 = vmatpush.bf16.msra.mxu0 %v1324
        %1710 = vmatpush.bf16.msra.mxu0 %v1320
        %1711 = vmatpush.bf16.msra.mxu0 %v1316
        %1712 = vmatpush.bf16.msra.mxu0 %v1312
        %1713 = vmatpush.bf16.msra.mxu0 %v1308
        %1714 = vmatpush.bf16.msra.mxu0 %v1304
        %1715 = vmatmul.bf16.gmra.mxu0 %v345
        %v1716 = vpop.f32.mrf.mxu0
        %v1717 = vadd.f32 %v1703, %v1716
        %v1718 = vpop.f32.mrf.mxu0
        %v1719 = vadd.f32 %v1705, %v1718
        %1720 = vdwg.mxu0
        %1721 = vmatpush.bf16.msra.mxu0 0
        %1722 = vmatpush.bf16.msra.mxu0 0
        %1723 = vmatpush.bf16.msra.mxu0 0
        %1724 = vmatpush.bf16.msra.mxu0 0
        %1725 = vmatpush.bf16.msra.mxu0 0
        %1726 = vmatpush.bf16.msra.mxu0 0
        %1727 = vmatpush.bf16.msra.mxu0 0
        %1728 = vmatpush.bf16.msra.mxu0 %v1336
        %1729 = vmatmul.bf16.gmra.mxu0 %v1537
        %v1730 = vpop.f32.mrf.mxu0
        %v1731 = vadd.f32 %v1717, %v1730
        %v1732 = vpop.f32.mrf.mxu0
        %v1733 = vadd.f32 %v1719, %v1732
        %1734 = vdwg.mxu0
        %1735 = vmatpush.bf16.msra.mxu0 %v1173
        %1736 = vmatpush.bf16.msra.mxu0 %v1169
        %1737 = vmatpush.bf16.msra.mxu0 %v1165
        %1738 = vmatpush.bf16.msra.mxu0 %v1161
        %1739 = vmatpush.bf16.msra.mxu0 %v1157
        %1740 = vmatpush.bf16.msra.mxu0 %v1153
        %1741 = vmatpush.bf16.msra.mxu0 %v1149
        %1742 = vmatpush.bf16.msra.mxu0 %v1145
        %1743 = vmatmul.bf16.gmra.mxu0 %v340
        %v1744 = vpop.f32.mrf.mxu0
        %v1745 = vadd.f32 %v549, %v1744
        %v1746 = vpop.f32.mrf.mxu0
        %v1747 = vadd.f32 %v549, %v1746
        %1748 = vdwg.mxu0
        %1749 = vmatpush.bf16.msra.mxu0 %v1205
        %1750 = vmatpush.bf16.msra.mxu0 %v1201
        %1751 = vmatpush.bf16.msra.mxu0 %v1197
        %1752 = vmatpush.bf16.msra.mxu0 %v1193
        %1753 = vmatpush.bf16.msra.mxu0 %v1189
        %1754 = vmatpush.bf16.msra.mxu0 %v1185
        %1755 = vmatpush.bf16.msra.mxu0 %v1181
        %1756 = vmatpush.bf16.msra.mxu0 %v1177
        %1757 = vmatmul.bf16.gmra.mxu0 %v341
        %v1758 = vpop.f32.mrf.mxu0
        %v1759 = vadd.f32 %v1745, %v1758
        %v1760 = vpop.f32.mrf.mxu0
        %v1761 = vadd.f32 %v1747, %v1760
        %1762 = vdwg.mxu0
        %1763 = vmatpush.bf16.msra.mxu0 %v1237
        %1764 = vmatpush.bf16.msra.mxu0 %v1233
        %1765 = vmatpush.bf16.msra.mxu0 %v1229
        %1766 = vmatpush.bf16.msra.mxu0 %v1225
        %1767 = vmatpush.bf16.msra.mxu0 %v1221
        %1768 = vmatpush.bf16.msra.mxu0 %v1217
        %1769 = vmatpush.bf16.msra.mxu0 %v1213
        %1770 = vmatpush.bf16.msra.mxu0 %v1209
        %1771 = vmatmul.bf16.gmra.mxu0 %v342
        %v1772 = vpop.f32.mrf.mxu0
        %v1773 = vadd.f32 %v1759, %v1772
        %v1774 = vpop.f32.mrf.mxu0
        %v1775 = vadd.f32 %v1761, %v1774
        %1776 = vdwg.mxu0
        %1777 = vmatpush.bf16.msra.mxu0 %v1269
        %1778 = vmatpush.bf16.msra.mxu0 %v1265
        %1779 = vmatpush.bf16.msra.mxu0 %v1261
        %1780 = vmatpush.bf16.msra.mxu0 %v1257
        %1781 = vmatpush.bf16.msra.mxu0 %v1253
        %1782 = vmatpush.bf16.msra.mxu0 %v1249
        %1783 = vmatpush.bf16.msra.mxu0 %v1245
        %1784 = vmatpush.bf16.msra.mxu0 %v1241
        %1785 = vmatmul.bf16.gmra.mxu0 %v343
        %v1786 = vpop.f32.mrf.mxu0
        %v1787 = vadd.f32 %v1773, %v1786
        %v1788 = vpop.f32.mrf.mxu0
        %v1789 = vadd.f32 %v1775, %v1788
        %1790 = vdwg.mxu0
        %1791 = vmatpush.bf16.msra.mxu0 %v1301
        %1792 = vmatpush.bf16.msra.mxu0 %v1297
        %1793 = vmatpush.bf16.msra.mxu0 %v1293
        %1794 = vmatpush.bf16.msra.mxu0 %v1289
        %1795 = vmatpush.bf16.msra.mxu0 %v1285
        %1796 = vmatpush.bf16.msra.mxu0 %v1281
        %1797 = vmatpush.bf16.msra.mxu0 %v1277
        %1798 = vmatpush.bf16.msra.mxu0 %v1273
        %1799 = vmatmul.bf16.gmra.mxu0 %v344
        %v1800 = vpop.f32.mrf.mxu0
        %v1801 = vadd.f32 %v1787, %v1800
        %v1802 = vpop.f32.mrf.mxu0
        %v1803 = vadd.f32 %v1789, %v1802
        %1804 = vdwg.mxu0
        %1805 = vmatpush.bf16.msra.mxu0 %v1333
        %1806 = vmatpush.bf16.msra.mxu0 %v1329
        %1807 = vmatpush.bf16.msra.mxu0 %v1325
        %1808 = vmatpush.bf16.msra.mxu0 %v1321
        %1809 = vmatpush.bf16.msra.mxu0 %v1317
        %1810 = vmatpush.bf16.msra.mxu0 %v1313
        %1811 = vmatpush.bf16.msra.mxu0 %v1309
        %1812 = vmatpush.bf16.msra.mxu0 %v1305
        %1813 = vmatmul.bf16.gmra.mxu0 %v345
        %v1814 = vpop.f32.mrf.mxu0
        %v1815 = vadd.f32 %v1801, %v1814
        %v1816 = vpop.f32.mrf.mxu0
        %v1817 = vadd.f32 %v1803, %v1816
        %1818 = vdwg.mxu0
        %1819 = vmatpush.bf16.msra.mxu0 0
        %1820 = vmatpush.bf16.msra.mxu0 0
        %1821 = vmatpush.bf16.msra.mxu0 0
        %1822 = vmatpush.bf16.msra.mxu0 0
        %1823 = vmatpush.bf16.msra.mxu0 0
        %1824 = vmatpush.bf16.msra.mxu0 0
        %1825 = vmatpush.bf16.msra.mxu0 0
        %1826 = vmatpush.bf16.msra.mxu0 %v1337
        %1827 = vmatmul.bf16.gmra.mxu0 %v1537
        %v1828 = vpop.f32.mrf.mxu0
        %v1829 = vadd.f32 %v1815, %v1828
        %v1830 = vpop.f32.mrf.mxu0
        %v1831 = vadd.f32 %v1817, %v1830
        %1832 = vdwg.mxu0
        %1833 = vmatpush.bf16.msra.mxu0 %v1174
        %1834 = vmatpush.bf16.msra.mxu0 %v1170
        %1835 = vmatpush.bf16.msra.mxu0 %v1166
        %1836 = vmatpush.bf16.msra.mxu0 %v1162
        %1837 = vmatpush.bf16.msra.mxu0 %v1158
        %1838 = vmatpush.bf16.msra.mxu0 %v1154
        %1839 = vmatpush.bf16.msra.mxu0 %v1150
        %1840 = vmatpush.bf16.msra.mxu0 %v1146
        %1841 = vmatmul.bf16.gmra.mxu0 %v340
        %v1842 = vpop.f32.mrf.mxu0
        %v1843 = vadd.f32 %v550, %v1842
        %v1844 = vpop.f32.mrf.mxu0
        %v1845 = vadd.f32 %v550, %v1844
        %1846 = vdwg.mxu0
        %1847 = vmatpush.bf16.msra.mxu0 %v1206
        %1848 = vmatpush.bf16.msra.mxu0 %v1202
        %1849 = vmatpush.bf16.msra.mxu0 %v1198
        %1850 = vmatpush.bf16.msra.mxu0 %v1194
        %1851 = vmatpush.bf16.msra.mxu0 %v1190
        %1852 = vmatpush.bf16.msra.mxu0 %v1186
        %1853 = vmatpush.bf16.msra.mxu0 %v1182
        %1854 = vmatpush.bf16.msra.mxu0 %v1178
        %1855 = vmatmul.bf16.gmra.mxu0 %v341
        %v1856 = vpop.f32.mrf.mxu0
        %v1857 = vadd.f32 %v1843, %v1856
        %v1858 = vpop.f32.mrf.mxu0
        %v1859 = vadd.f32 %v1845, %v1858
        %1860 = vdwg.mxu0
        %1861 = vmatpush.bf16.msra.mxu0 %v1238
        %1862 = vmatpush.bf16.msra.mxu0 %v1234
        %1863 = vmatpush.bf16.msra.mxu0 %v1230
        %1864 = vmatpush.bf16.msra.mxu0 %v1226
        %1865 = vmatpush.bf16.msra.mxu0 %v1222
        %1866 = vmatpush.bf16.msra.mxu0 %v1218
        %1867 = vmatpush.bf16.msra.mxu0 %v1214
        %1868 = vmatpush.bf16.msra.mxu0 %v1210
        %1869 = vmatmul.bf16.gmra.mxu0 %v342
        %v1870 = vpop.f32.mrf.mxu0
        %v1871 = vadd.f32 %v1857, %v1870
        %v1872 = vpop.f32.mrf.mxu0
        %v1873 = vadd.f32 %v1859, %v1872
        %1874 = vdwg.mxu0
        %1875 = vmatpush.bf16.msra.mxu0 %v1270
        %1876 = vmatpush.bf16.msra.mxu0 %v1266
        %1877 = vmatpush.bf16.msra.mxu0 %v1262
        %1878 = vmatpush.bf16.msra.mxu0 %v1258
        %1879 = vmatpush.bf16.msra.mxu0 %v1254
        %1880 = vmatpush.bf16.msra.mxu0 %v1250
        %1881 = vmatpush.bf16.msra.mxu0 %v1246
        %1882 = vmatpush.bf16.msra.mxu0 %v1242
        %1883 = vmatmul.bf16.gmra.mxu0 %v343
        %v1884 = vpop.f32.mrf.mxu0
        %v1885 = vadd.f32 %v1871, %v1884
        %v1886 = vpop.f32.mrf.mxu0
        %v1887 = vadd.f32 %v1873, %v1886
        %1888 = vdwg.mxu0
        %1889 = vmatpush.bf16.msra.mxu0 %v1302
        %1890 = vmatpush.bf16.msra.mxu0 %v1298
        %1891 = vmatpush.bf16.msra.mxu0 %v1294
        %1892 = vmatpush.bf16.msra.mxu0 %v1290
        %1893 = vmatpush.bf16.msra.mxu0 %v1286
        %1894 = vmatpush.bf16.msra.mxu0 %v1282
        %1895 = vmatpush.bf16.msra.mxu0 %v1278
        %1896 = vmatpush.bf16.msra.mxu0 %v1274
        %1897 = vmatmul.bf16.gmra.mxu0 %v344
        %v1898 = vpop.f32.mrf.mxu0
        %v1899 = vadd.f32 %v1885, %v1898
        %v1900 = vpop.f32.mrf.mxu0
        %v1901 = vadd.f32 %v1887, %v1900
        %1902 = vdwg.mxu0
        %1903 = vmatpush.bf16.msra.mxu0 %v1334
        %1904 = vmatpush.bf16.msra.mxu0 %v1330
        %1905 = vmatpush.bf16.msra.mxu0 %v1326
        %1906 = vmatpush.bf16.msra.mxu0 %v1322
        %1907 = vmatpush.bf16.msra.mxu0 %v1318
        %1908 = vmatpush.bf16.msra.mxu0 %v1314
        %1909 = vmatpush.bf16.msra.mxu0 %v1310
        %1910 = vmatpush.bf16.msra.mxu0 %v1306
        %1911 = vmatmul.bf16.gmra.mxu0 %v345
        %v1912 = vpop.f32.mrf.mxu0
        %v1913 = vadd.f32 %v1899, %v1912
        %v1914 = vpop.f32.mrf.mxu0
        %v1915 = vadd.f32 %v1901, %v1914
        %1916 = vdwg.mxu0
        %1917 = vmatpush.bf16.msra.mxu0 0
        %1918 = vmatpush.bf16.msra.mxu0 0
        %1919 = vmatpush.bf16.msra.mxu0 0
        %1920 = vmatpush.bf16.msra.mxu0 0
        %1921 = vmatpush.bf16.msra.mxu0 0
        %1922 = vmatpush.bf16.msra.mxu0 0
        %1923 = vmatpush.bf16.msra.mxu0 0
        %1924 = vmatpush.bf16.msra.mxu0 %v1338
        %1925 = vmatmul.bf16.gmra.mxu0 %v1537
        %v1926 = vpop.f32.mrf.mxu0
        %v1927 = vadd.f32 %v1913, %v1926
        %v1928 = vpop.f32.mrf.mxu0
        %v1929 = vadd.f32 %v1915, %v1928
        %1930 = vdwg.mxu0
        %v1931 = vmax.f32 %v1633, 0.0
        %v1932 = vmax.f32 %v1731, 0.0
        %v1933 = vmax.f32 %v1829, 0.0
        %v1934 = vmax.f32 %v1927, 0.0
        %v1935 = vmax.f32 %v1635, 0.0
        %v1936 = vmax.f32 %v1733, 0.0
        %v1937 = vmax.f32 %v1831, 0.0
        %v1938 = vmax.f32 %v1929, 0.0
        %v1939 = vpack.c.bf16 %v1935, %v1931
        %v1940 = vpack.c.bf16 %v1936, %v1932
        %v1941 = vpack.c.bf16 %v1937, %v1933
        %v1942 = vpack.c.bf16 %v1938, %v1934
        %v1943 = vld [vmem:[#allocation2] sm:$0xff]
        %v1944 = vld [vmem:[#allocation2 + $0x8] sm:$0xff]
        %v1945 = vld [vmem:[#allocation2 + $0x10] sm:$0xff]
        %v1946 = vld [vmem:[#allocation2 + $0x18] sm:$0xff]
        %v1947 = vld [vmem:[#allocation2 + $0x20] sm:$0xff]
        %v1948 = vld [vmem:[#allocation2 + $0x28] sm:$0xff]
        %v1949 = vld [vmem:[#allocation2 + $0x30] sm:$0xff]
        %v1950 = vld [vmem:[#allocation2 + $0x38] sm:$0xff]
        %v1951 = vld [vmem:[#allocation2 + $0x40] sm:$0xff]
        %v1952 = vld [vmem:[#allocation2 + $0x48] sm:$0xff]
        %v1953 = vld [vmem:[#allocation2 + $0x50] sm:$0xff]
        %v1954 = vld [vmem:[#allocation2 + $0x58] sm:$0xff]
        %v1955 = vld [vmem:[#allocation2 + $0x60] sm:$0xff]
        %v1956 = vld [vmem:[#allocation2 + $0x68] sm:$0xff]
        %v1957 = vld [vmem:[#allocation2 + $0x70] sm:$0xff]
        %v1958 = vld [vmem:[#allocation2 + $0x78] sm:$0xff]
        %v1959 = vld [vmem:[#allocation2 + $0x80] sm:$0xff]
        %v1960 = vld [vmem:[#allocation2 + $0x88] sm:$0xff]
        %v1961 = vld [vmem:[#allocation2 + $0x90] sm:$0xff]
        %v1962 = vld [vmem:[#allocation2 + $0x98] sm:$0xff]
        %v1963 = vld [vmem:[#allocation2 + $0xa0] sm:$0xff]
        %v1964 = vld [vmem:[#allocation2 + $0xa8] sm:$0xff]
        %v1965 = vld [vmem:[#allocation2 + $0xb0] sm:$0xff]
        %v1966 = vld [vmem:[#allocation2 + $0xb8] sm:$0xff]
        %v1967 = vld [vmem:[#allocation2 + $0xc0] sm:$0xff]
        %v1968 = vld [vmem:[#allocation2 + $0xc8] sm:$0xff]
        %v1969 = vld [vmem:[#allocation2 + $0xd0] sm:$0xff]
        %v1970 = vld [vmem:[#allocation2 + $0xd8] sm:$0xff]
        %v1971 = vld [vmem:[#allocation2 + $0xe0] sm:$0xff]
        %v1972 = vld [vmem:[#allocation2 + $0xe8] sm:$0xff]
        %v1973 = vld [vmem:[#allocation2 + $0xf0] sm:$0xff]
        %v1974 = vld [vmem:[#allocation2 + $0xf8] sm:$0xff]
        %v1975 = vld [vmem:[#allocation2 + $0x100] sm:$0xff]
        %v1976 = vld [vmem:[#allocation2 + $0x108] sm:$0xff]
        %v1977 = vld [vmem:[#allocation2 + $0x110] sm:$0xff]
        %v1978 = vld [vmem:[#allocation2 + $0x118] sm:$0xff]
        %v1979 = vld [vmem:[#allocation2 + $0x120] sm:$0xff]
        %v1980 = vld [vmem:[#allocation2 + $0x128] sm:$0xff]
        %v1981 = vld [vmem:[#allocation2 + $0x130] sm:$0xff]
        %v1982 = vld [vmem:[#allocation2 + $0x138] sm:$0xff]
        %v1983 = vld [vmem:[#allocation2 + $0x140] sm:$0xff]
        %v1984 = vld [vmem:[#allocation2 + $0x148] sm:$0xff]
        %v1985 = vld [vmem:[#allocation2 + $0x150] sm:$0xff]
        %v1986 = vld [vmem:[#allocation2 + $0x158] sm:$0xff]
        %v1987 = vld [vmem:[#allocation2 + $0x160] sm:$0xff]
        %v1988 = vld [vmem:[#allocation2 + $0x168] sm:$0xff]
        %v1989 = vld [vmem:[#allocation2 + $0x170] sm:$0xff]
        %v1990 = vld [vmem:[#allocation2 + $0x178] sm:$0xff]
        %v1991 = vld [vmem:[#allocation2 + $0x180] sm:$0xff]
        %v1992 = vld [vmem:[#allocation2 + $0x188] sm:$0xff]
        %v1993 = vld [vmem:[#allocation2 + $0x190] sm:$0xff]
        %v1994 = vld [vmem:[#allocation2 + $0x198] sm:$0xff]
        %v1995 = vld [vmem:[#allocation2 + $0x1a0] sm:$0xff]
        %v1996 = vld [vmem:[#allocation2 + $0x1a8] sm:$0xff]
        %v1997 = vld [vmem:[#allocation2 + $0x1b0] sm:$0xff]
        %v1998 = vld [vmem:[#allocation2 + $0x1b8] sm:$0xff]
        %v1999 = vld [vmem:[#allocation2 + $0x1c0] sm:$0xff]
        %v2000 = vld [vmem:[#allocation2 + $0x1c8] sm:$0xff]
        %v2001 = vld [vmem:[#allocation2 + $0x1d0] sm:$0xff]
        %v2002 = vld [vmem:[#allocation2 + $0x1d8] sm:$0xff]
        %v2003 = vld [vmem:[#allocation2 + $0x1e0] sm:$0xff]
        %v2004 = vld [vmem:[#allocation2 + $0x1e8] sm:$0xff]
        %v2005 = vld [vmem:[#allocation2 + $0x1f0] sm:$0xff]
        %v2006 = vld [vmem:[#allocation2 + $0x1f8] sm:$0xff]
        %v2007 = vld [vmem:[#allocation2 + $0x200] sm:$0xff]
        %v2008 = vld [vmem:[#allocation2 + $0x208] sm:$0xff]
        %v2009 = vld [vmem:[#allocation2 + $0x210] sm:$0xff]
        %v2010 = vld [vmem:[#allocation2 + $0x218] sm:$0xff]
        %v2011 = vld [vmem:[#allocation2 + $0x220] sm:$0xff]
        %v2012 = vld [vmem:[#allocation2 + $0x228] sm:$0xff]
        %v2013 = vld [vmem:[#allocation2 + $0x230] sm:$0xff]
        %v2014 = vld [vmem:[#allocation2 + $0x238] sm:$0xff]
        %v2015 = vld [vmem:[#allocation2 + $0x240] sm:$0xff]
        %v2016 = vld [vmem:[#allocation2 + $0x248] sm:$0xff]
        %v2017 = vld [vmem:[#allocation2 + $0x250] sm:$0xff]
        %v2018 = vld [vmem:[#allocation2 + $0x258] sm:$0xff]
        %v2019 = vld [vmem:[#allocation2 + $0x260] sm:$0xff]
        %v2020 = vld [vmem:[#allocation2 + $0x268] sm:$0xff]
        %v2021 = vld [vmem:[#allocation2 + $0x270] sm:$0xff]
        %v2022 = vld [vmem:[#allocation2 + $0x278] sm:$0xff]
        %v2023 = vld [vmem:[#allocation2 + $0x280] sm:$0xff]
        %v2024 = vld [vmem:[#allocation2 + $0x288] sm:$0xff]
        %v2025 = vld [vmem:[#allocation2 + $0x290] sm:$0xff]
        %v2026 = vld [vmem:[#allocation2 + $0x298] sm:$0xff]
        %v2027 = vld [vmem:[#allocation2 + $0x2a0] sm:$0xff]
        %v2028 = vld [vmem:[#allocation2 + $0x2a8] sm:$0xff]
        %v2029 = vld [vmem:[#allocation2 + $0x2b0] sm:$0xff]
        %v2030 = vld [vmem:[#allocation2 + $0x2b8] sm:$0xff]
        %v2031 = vld [vmem:[#allocation2 + $0x2c0] sm:$0xff]
        %v2032 = vld [vmem:[#allocation2 + $0x2c8] sm:$0xff]
        %v2033 = vld [vmem:[#allocation2 + $0x2d0] sm:$0xff]
        %v2034 = vld [vmem:[#allocation2 + $0x2d8] sm:$0xff]
        %v2035 = vld [vmem:[#allocation2 + $0x2e0] sm:$0xff]
        %v2036 = vld [vmem:[#allocation2 + $0x2e8] sm:$0xff]
        %v2037 = vld [vmem:[#allocation2 + $0x2f0] sm:$0xff]
        %v2038 = vld [vmem:[#allocation2 + $0x2f8] sm:$0xff]
        %v2039 = vld [vmem:[#allocation2 + $0x300] sm:$0xff]
        %v2040 = vld [vmem:[#allocation2 + $0x308] sm:$0xff]
        %v2041 = vld [vmem:[#allocation2 + $0x310] sm:$0xff]
        %v2042 = vld [vmem:[#allocation2 + $0x318] sm:$0xff]
        %v2043 = vld [vmem:[#allocation2 + $0x320] sm:$0xff]
        %v2044 = vld [vmem:[#allocation2 + $0x328] sm:$0xff]
        %v2045 = vld [vmem:[#allocation2 + $0x330] sm:$0xff]
        %v2046 = vld [vmem:[#allocation2 + $0x338] sm:$0xff]
        %v2047 = vld [vmem:[#allocation2 + $0x340] sm:$0xff]
        %v2048 = vld [vmem:[#allocation2 + $0x348] sm:$0xff]
        %v2049 = vld [vmem:[#allocation2 + $0x350] sm:$0xff]
        %v2050 = vld [vmem:[#allocation2 + $0x358] sm:$0xff]
        %v2051 = vld [vmem:[#allocation2 + $0x360] sm:$0xff]
        %v2052 = vld [vmem:[#allocation2 + $0x368] sm:$0xff]
        %v2053 = vld [vmem:[#allocation2 + $0x370] sm:$0xff]
        %v2054 = vld [vmem:[#allocation2 + $0x378] sm:$0xff]
        %v2055 = vld [vmem:[#allocation2 + $0x380] sm:$0xff]
        %v2056 = vld [vmem:[#allocation2 + $0x388] sm:$0xff]
        %v2057 = vld [vmem:[#allocation2 + $0x390] sm:$0xff]
        %v2058 = vld [vmem:[#allocation2 + $0x398] sm:$0xff]
        %v2059 = vld [vmem:[#allocation2 + $0x3a0] sm:$0xff]
        %v2060 = vld [vmem:[#allocation2 + $0x3a8] sm:$0xff]
        %v2061 = vld [vmem:[#allocation2 + $0x3b0] sm:$0xff]
        %v2062 = vld [vmem:[#allocation2 + $0x3b8] sm:$0xff]
        %v2063 = vld [vmem:[#allocation2 + $0x3c0] sm:$0xff]
        %v2064 = vld [vmem:[#allocation2 + $0x3c8] sm:$0xff]
        %v2065 = vld [vmem:[#allocation2 + $0x3d0] sm:$0xff]
        %v2066 = vld [vmem:[#allocation2 + $0x3d8] sm:$0xff]
        %v2067 = vld [vmem:[#allocation2 + $0x3e0] sm:$0xff]
        %v2068 = vld [vmem:[#allocation2 + $0x3e8] sm:$0xff]
        %v2069 = vld [vmem:[#allocation2 + $0x3f0] sm:$0xff]
        %v2070 = vld [vmem:[#allocation2 + $0x3f8] sm:$0xff]
        %v2072 = vperm.slane %v348, 0
        %v2073 = vperm.slane %v348, 1
        %v2074 = vperm.slane %v348, 2
        %v2075 = vperm.slane %v348, 3
        %v2208 = vunpack.c.l.b16 %v1943
        %v2209 = vunpack.c.h.b16 %v1943
        %v2210 = vunpack.c.l.b16 %v1944
        %v2211 = vunpack.c.h.b16 %v1944
        %v2212 = vunpack.c.l.b16 %v1945
        %v2213 = vunpack.c.h.b16 %v1945
        %v2214 = vunpack.c.l.b16 %v1946
        %v2215 = vunpack.c.h.b16 %v1946
        %v2216 = vunpack.c.l.b16 %v1947
        %v2217 = vunpack.c.h.b16 %v1947
        %v2218 = vunpack.c.l.b16 %v1948
        %v2219 = vunpack.c.h.b16 %v1948
        %v2220 = vunpack.c.l.b16 %v1949
        %v2221 = vunpack.c.h.b16 %v1949
        %v2222 = vunpack.c.l.b16 %v1950
        %v2223 = vunpack.c.h.b16 %v1950
        %v2224 = vunpack.c.l.b16 %v1951
        %v2225 = vunpack.c.h.b16 %v1951
        %v2226 = vunpack.c.l.b16 %v1952
        %v2227 = vunpack.c.h.b16 %v1952
        %v2228 = vunpack.c.l.b16 %v1953
        %v2229 = vunpack.c.h.b16 %v1953
        %v2230 = vunpack.c.l.b16 %v1954
        %v2231 = vunpack.c.h.b16 %v1954
        %v2232 = vunpack.c.l.b16 %v1955
        %v2233 = vunpack.c.h.b16 %v1955
        %v2234 = vunpack.c.l.b16 %v1956
        %v2235 = vunpack.c.h.b16 %v1956
        %v2236 = vunpack.c.l.b16 %v1957
        %v2237 = vunpack.c.h.b16 %v1957
        %v2238 = vunpack.c.l.b16 %v1958
        %v2239 = vunpack.c.h.b16 %v1958
        %v2240 = vunpack.c.l.b16 %v1959
        %v2241 = vunpack.c.h.b16 %v1959
        %v2242 = vunpack.c.l.b16 %v1960
        %v2243 = vunpack.c.h.b16 %v1960
        %v2244 = vunpack.c.l.b16 %v1961
        %v2245 = vunpack.c.h.b16 %v1961
        %v2246 = vunpack.c.l.b16 %v1962
        %v2247 = vunpack.c.h.b16 %v1962
        %v2248 = vunpack.c.l.b16 %v1963
        %v2249 = vunpack.c.h.b16 %v1963
        %v2250 = vunpack.c.l.b16 %v1964
        %v2251 = vunpack.c.h.b16 %v1964
        %v2252 = vunpack.c.l.b16 %v1965
        %v2253 = vunpack.c.h.b16 %v1965
        %v2254 = vunpack.c.l.b16 %v1966
        %v2255 = vunpack.c.h.b16 %v1966
        %v2256 = vunpack.c.l.b16 %v1967
        %v2257 = vunpack.c.h.b16 %v1967
        %v2258 = vunpack.c.l.b16 %v1968
        %v2259 = vunpack.c.h.b16 %v1968
        %v2260 = vunpack.c.l.b16 %v1969
        %v2261 = vunpack.c.h.b16 %v1969
        %v2262 = vunpack.c.l.b16 %v1970
        %v2263 = vunpack.c.h.b16 %v1970
        %v2264 = vunpack.c.l.b16 %v1971
        %v2265 = vunpack.c.h.b16 %v1971
        %v2266 = vunpack.c.l.b16 %v1972
        %v2267 = vunpack.c.h.b16 %v1972
        %v2268 = vunpack.c.l.b16 %v1973
        %v2269 = vunpack.c.h.b16 %v1973
        %v2270 = vunpack.c.l.b16 %v1974
        %v2271 = vunpack.c.h.b16 %v1974
        %v2272 = vunpack.c.l.b16 %v1975
        %v2273 = vunpack.c.h.b16 %v1975
        %v2274 = vunpack.c.l.b16 %v1976
        %v2275 = vunpack.c.h.b16 %v1976
        %v2276 = vunpack.c.l.b16 %v1977
        %v2277 = vunpack.c.h.b16 %v1977
        %v2278 = vunpack.c.l.b16 %v1978
        %v2279 = vunpack.c.h.b16 %v1978
        %v2280 = vunpack.c.l.b16 %v1979
        %v2281 = vunpack.c.h.b16 %v1979
        %v2282 = vunpack.c.l.b16 %v1980
        %v2283 = vunpack.c.h.b16 %v1980
        %v2284 = vunpack.c.l.b16 %v1981
        %v2285 = vunpack.c.h.b16 %v1981
        %v2286 = vunpack.c.l.b16 %v1982
        %v2287 = vunpack.c.h.b16 %v1982
        %v2288 = vunpack.c.l.b16 %v1983
        %v2289 = vunpack.c.h.b16 %v1983
        %v2290 = vunpack.c.l.b16 %v1984
        %v2291 = vunpack.c.h.b16 %v1984
        %v2292 = vunpack.c.l.b16 %v1985
        %v2293 = vunpack.c.h.b16 %v1985
        %v2294 = vunpack.c.l.b16 %v1986
        %v2295 = vunpack.c.h.b16 %v1986
        %v2296 = vunpack.c.l.b16 %v1987
        %v2297 = vunpack.c.h.b16 %v1987
        %v2298 = vunpack.c.l.b16 %v1988
        %v2299 = vunpack.c.h.b16 %v1988
        %v2300 = vunpack.c.l.b16 %v1989
        %v2301 = vunpack.c.h.b16 %v1989
        %v2302 = vunpack.c.l.b16 %v1990
        %v2303 = vunpack.c.h.b16 %v1990
        %v2304 = vunpack.c.l.b16 %v1991
        %v2305 = vunpack.c.h.b16 %v1991
        %v2306 = vunpack.c.l.b16 %v1992
        %v2307 = vunpack.c.h.b16 %v1992
        %v2308 = vunpack.c.l.b16 %v1993
        %v2309 = vunpack.c.h.b16 %v1993
        %v2310 = vunpack.c.l.b16 %v1994
        %v2311 = vunpack.c.h.b16 %v1994
        %v2312 = vunpack.c.l.b16 %v1995
        %v2313 = vunpack.c.h.b16 %v1995
        %v2314 = vunpack.c.l.b16 %v1996
        %v2315 = vunpack.c.h.b16 %v1996
        %v2316 = vunpack.c.l.b16 %v1997
        %v2317 = vunpack.c.h.b16 %v1997
        %v2318 = vunpack.c.l.b16 %v1998
        %v2319 = vunpack.c.h.b16 %v1998
        %v2320 = vunpack.c.l.b16 %v1999
        %v2321 = vunpack.c.h.b16 %v1999
        %v2322 = vunpack.c.l.b16 %v2000
        %v2323 = vunpack.c.h.b16 %v2000
        %v2324 = vunpack.c.l.b16 %v2001
        %v2325 = vunpack.c.h.b16 %v2001
        %v2326 = vunpack.c.l.b16 %v2002
        %v2327 = vunpack.c.h.b16 %v2002
        %v2328 = vunpack.c.l.b16 %v2003
        %v2329 = vunpack.c.h.b16 %v2003
        %v2330 = vunpack.c.l.b16 %v2004
        %v2331 = vunpack.c.h.b16 %v2004
        %v2332 = vunpack.c.l.b16 %v2005
        %v2333 = vunpack.c.h.b16 %v2005
        %v2334 = vunpack.c.l.b16 %v2006
        %v2335 = vunpack.c.h.b16 %v2006
        %v2336 = vunpack.c.l.b16 %v2007
        %v2337 = vunpack.c.h.b16 %v2007
        %v2338 = vunpack.c.l.b16 %v2008
        %v2339 = vunpack.c.h.b16 %v2008
        %v2340 = vunpack.c.l.b16 %v2009
        %v2341 = vunpack.c.h.b16 %v2009
        %v2342 = vunpack.c.l.b16 %v2010
        %v2343 = vunpack.c.h.b16 %v2010
        %v2344 = vunpack.c.l.b16 %v2011
        %v2345 = vunpack.c.h.b16 %v2011
        %v2346 = vunpack.c.l.b16 %v2012
        %v2347 = vunpack.c.h.b16 %v2012
        %v2348 = vunpack.c.l.b16 %v2013
        %v2349 = vunpack.c.h.b16 %v2013
        %v2350 = vunpack.c.l.b16 %v2014
        %v2351 = vunpack.c.h.b16 %v2014
        %v2352 = vunpack.c.l.b16 %v2015
        %v2353 = vunpack.c.h.b16 %v2015
        %v2354 = vunpack.c.l.b16 %v2016
        %v2355 = vunpack.c.h.b16 %v2016
        %v2356 = vunpack.c.l.b16 %v2017
        %v2357 = vunpack.c.h.b16 %v2017
        %v2358 = vunpack.c.l.b16 %v2018
        %v2359 = vunpack.c.h.b16 %v2018
        %v2360 = vunpack.c.l.b16 %v2019
        %v2361 = vunpack.c.h.b16 %v2019
        %v2362 = vunpack.c.l.b16 %v2020
        %v2363 = vunpack.c.h.b16 %v2020
        %v2364 = vunpack.c.l.b16 %v2021
        %v2365 = vunpack.c.h.b16 %v2021
        %v2366 = vunpack.c.l.b16 %v2022
        %v2367 = vunpack.c.h.b16 %v2022
        %v2368 = vunpack.c.l.b16 %v2023
        %v2369 = vunpack.c.h.b16 %v2023
        %v2370 = vunpack.c.l.b16 %v2024
        %v2371 = vunpack.c.h.b16 %v2024
        %v2372 = vunpack.c.l.b16 %v2025
        %v2373 = vunpack.c.h.b16 %v2025
        %v2374 = vunpack.c.l.b16 %v2026
        %v2375 = vunpack.c.h.b16 %v2026
        %v2376 = vunpack.c.l.b16 %v2027
        %v2377 = vunpack.c.h.b16 %v2027
        %v2378 = vunpack.c.l.b16 %v2028
        %v2379 = vunpack.c.h.b16 %v2028
        %v2380 = vunpack.c.l.b16 %v2029
        %v2381 = vunpack.c.h.b16 %v2029
        %v2382 = vunpack.c.l.b16 %v2030
        %v2383 = vunpack.c.h.b16 %v2030
        %v2384 = vunpack.c.l.b16 %v2031
        %v2385 = vunpack.c.h.b16 %v2031
        %v2386 = vunpack.c.l.b16 %v2032
        %v2387 = vunpack.c.h.b16 %v2032
        %v2388 = vunpack.c.l.b16 %v2033
        %v2389 = vunpack.c.h.b16 %v2033
        %v2390 = vunpack.c.l.b16 %v2034
        %v2391 = vunpack.c.h.b16 %v2034
        %v2392 = vunpack.c.l.b16 %v2035
        %v2393 = vunpack.c.h.b16 %v2035
        %v2394 = vunpack.c.l.b16 %v2036
        %v2395 = vunpack.c.h.b16 %v2036
        %v2396 = vunpack.c.l.b16 %v2037
        %v2397 = vunpack.c.h.b16 %v2037
        %v2398 = vunpack.c.l.b16 %v2038
        %v2399 = vunpack.c.h.b16 %v2038
        %v2400 = vunpack.c.l.b16 %v2039
        %v2401 = vunpack.c.h.b16 %v2039
        %v2402 = vunpack.c.l.b16 %v2040
        %v2403 = vunpack.c.h.b16 %v2040
        %v2404 = vunpack.c.l.b16 %v2041
        %v2405 = vunpack.c.h.b16 %v2041
        %v2406 = vunpack.c.l.b16 %v2042
        %v2407 = vunpack.c.h.b16 %v2042
        %v2408 = vunpack.c.l.b16 %v2043
        %v2409 = vunpack.c.h.b16 %v2043
        %v2410 = vunpack.c.l.b16 %v2044
        %v2411 = vunpack.c.h.b16 %v2044
        %v2412 = vunpack.c.l.b16 %v2045
        %v2413 = vunpack.c.h.b16 %v2045
        %v2414 = vunpack.c.l.b16 %v2046
        %v2415 = vunpack.c.h.b16 %v2046
        %v2416 = vunpack.c.l.b16 %v2047
        %v2417 = vunpack.c.h.b16 %v2047
        %v2418 = vunpack.c.l.b16 %v2048
        %v2419 = vunpack.c.h.b16 %v2048
        %v2420 = vunpack.c.l.b16 %v2049
        %v2421 = vunpack.c.h.b16 %v2049
        %v2422 = vunpack.c.l.b16 %v2050
        %v2423 = vunpack.c.h.b16 %v2050
        %v2424 = vunpack.c.l.b16 %v2051
        %v2425 = vunpack.c.h.b16 %v2051
        %v2426 = vunpack.c.l.b16 %v2052
        %v2427 = vunpack.c.h.b16 %v2052
        %v2428 = vunpack.c.l.b16 %v2053
        %v2429 = vunpack.c.h.b16 %v2053
        %v2430 = vunpack.c.l.b16 %v2054
        %v2431 = vunpack.c.h.b16 %v2054
        %v2432 = vunpack.c.l.b16 %v2055
        %v2433 = vunpack.c.h.b16 %v2055
        %v2434 = vunpack.c.l.b16 %v2056
        %v2435 = vunpack.c.h.b16 %v2056
        %v2436 = vunpack.c.l.b16 %v2057
        %v2437 = vunpack.c.h.b16 %v2057
        %v2438 = vunpack.c.l.b16 %v2058
        %v2439 = vunpack.c.h.b16 %v2058
        %v2440 = vunpack.c.l.b16 %v2059
        %v2441 = vunpack.c.h.b16 %v2059
        %v2442 = vunpack.c.l.b16 %v2060
        %v2443 = vunpack.c.h.b16 %v2060
        %v2444 = vunpack.c.l.b16 %v2061
        %v2445 = vunpack.c.h.b16 %v2061
        %v2446 = vunpack.c.l.b16 %v2062
        %v2447 = vunpack.c.h.b16 %v2062
        %v2448 = vunpack.c.l.b16 %v2063
        %v2449 = vunpack.c.h.b16 %v2063
        %v2450 = vunpack.c.l.b16 %v2064
        %v2451 = vunpack.c.h.b16 %v2064
        %v2452 = vunpack.c.l.b16 %v2065
        %v2453 = vunpack.c.h.b16 %v2065
        %v2454 = vunpack.c.l.b16 %v2066
        %v2455 = vunpack.c.h.b16 %v2066
        %v2456 = vunpack.c.l.b16 %v2067
        %v2457 = vunpack.c.h.b16 %v2067
        %v2458 = vunpack.c.l.b16 %v2068
        %v2459 = vunpack.c.h.b16 %v2068
        %v2460 = vunpack.c.l.b16 %v2069
        %v2461 = vunpack.c.h.b16 %v2069
        %v2462 = vunpack.c.l.b16 %v2070
        %v2463 = vunpack.c.h.b16 %v2070
        %v2464 = vpack.c.b16 %v2212, %v2208
        %v2465 = vpack.c.b16 %v2213, %v2209
        %v2466 = vpack.c.b16 %v2214, %v2210
        %v2467 = vpack.c.b16 %v2215, %v2211
        %v2468 = vpack.c.b16 %v2220, %v2216
        %v2469 = vpack.c.b16 %v2221, %v2217
        %v2470 = vpack.c.b16 %v2222, %v2218
        %v2471 = vpack.c.b16 %v2223, %v2219
        %v2472 = vpack.c.b16 %v2228, %v2224
        %v2473 = vpack.c.b16 %v2229, %v2225
        %v2474 = vpack.c.b16 %v2230, %v2226
        %v2475 = vpack.c.b16 %v2231, %v2227
        %v2476 = vpack.c.b16 %v2236, %v2232
        %v2477 = vpack.c.b16 %v2237, %v2233
        %v2478 = vpack.c.b16 %v2238, %v2234
        %v2479 = vpack.c.b16 %v2239, %v2235
        %v2480 = vpack.c.b16 %v2244, %v2240
        %v2481 = vpack.c.b16 %v2245, %v2241
        %v2482 = vpack.c.b16 %v2246, %v2242
        %v2483 = vpack.c.b16 %v2247, %v2243
        %v2484 = vpack.c.b16 %v2252, %v2248
        %v2485 = vpack.c.b16 %v2253, %v2249
        %v2486 = vpack.c.b16 %v2254, %v2250
        %v2487 = vpack.c.b16 %v2255, %v2251
        %v2488 = vpack.c.b16 %v2260, %v2256
        %v2489 = vpack.c.b16 %v2261, %v2257
        %v2490 = vpack.c.b16 %v2262, %v2258
        %v2491 = vpack.c.b16 %v2263, %v2259
        %v2492 = vpack.c.b16 %v2268, %v2264
        %v2493 = vpack.c.b16 %v2269, %v2265
        %v2494 = vpack.c.b16 %v2270, %v2266
        %v2495 = vpack.c.b16 %v2271, %v2267
        %v2496 = vpack.c.b16 %v2276, %v2272
        %v2497 = vpack.c.b16 %v2277, %v2273
        %v2498 = vpack.c.b16 %v2278, %v2274
        %v2499 = vpack.c.b16 %v2279, %v2275
        %v2500 = vpack.c.b16 %v2284, %v2280
        %v2501 = vpack.c.b16 %v2285, %v2281
        %v2502 = vpack.c.b16 %v2286, %v2282
        %v2503 = vpack.c.b16 %v2287, %v2283
        %v2504 = vpack.c.b16 %v2292, %v2288
        %v2505 = vpack.c.b16 %v2293, %v2289
        %v2506 = vpack.c.b16 %v2294, %v2290
        %v2507 = vpack.c.b16 %v2295, %v2291
        %v2508 = vpack.c.b16 %v2300, %v2296
        %v2509 = vpack.c.b16 %v2301, %v2297
        %v2510 = vpack.c.b16 %v2302, %v2298
        %v2511 = vpack.c.b16 %v2303, %v2299
        %v2512 = vpack.c.b16 %v2308, %v2304
        %v2513 = vpack.c.b16 %v2309, %v2305
        %v2514 = vpack.c.b16 %v2310, %v2306
        %v2515 = vpack.c.b16 %v2311, %v2307
        %v2516 = vpack.c.b16 %v2316, %v2312
        %v2517 = vpack.c.b16 %v2317, %v2313
        %v2518 = vpack.c.b16 %v2318, %v2314
        %v2519 = vpack.c.b16 %v2319, %v2315
        %v2520 = vpack.c.b16 %v2324, %v2320
        %v2521 = vpack.c.b16 %v2325, %v2321
        %v2522 = vpack.c.b16 %v2326, %v2322
        %v2523 = vpack.c.b16 %v2327, %v2323
        %v2524 = vpack.c.b16 %v2332, %v2328
        %v2525 = vpack.c.b16 %v2333, %v2329
        %v2526 = vpack.c.b16 %v2334, %v2330
        %v2527 = vpack.c.b16 %v2335, %v2331
        %v2528 = vpack.c.b16 %v2340, %v2336
        %v2529 = vpack.c.b16 %v2341, %v2337
        %v2530 = vpack.c.b16 %v2342, %v2338
        %v2531 = vpack.c.b16 %v2343, %v2339
        %v2532 = vpack.c.b16 %v2348, %v2344
        %v2533 = vpack.c.b16 %v2349, %v2345
        %v2534 = vpack.c.b16 %v2350, %v2346
        %v2535 = vpack.c.b16 %v2351, %v2347
        %v2536 = vpack.c.b16 %v2356, %v2352
        %v2537 = vpack.c.b16 %v2357, %v2353
        %v2538 = vpack.c.b16 %v2358, %v2354
        %v2539 = vpack.c.b16 %v2359, %v2355
        %v2540 = vpack.c.b16 %v2364, %v2360
        %v2541 = vpack.c.b16 %v2365, %v2361
        %v2542 = vpack.c.b16 %v2366, %v2362
        %v2543 = vpack.c.b16 %v2367, %v2363
        %v2544 = vpack.c.b16 %v2372, %v2368
        %v2545 = vpack.c.b16 %v2373, %v2369
        %v2546 = vpack.c.b16 %v2374, %v2370
        %v2547 = vpack.c.b16 %v2375, %v2371
        %v2548 = vpack.c.b16 %v2380, %v2376
        %v2549 = vpack.c.b16 %v2381, %v2377
        %v2550 = vpack.c.b16 %v2382, %v2378
        %v2551 = vpack.c.b16 %v2383, %v2379
        %v2552 = vpack.c.b16 %v2388, %v2384
        %v2553 = vpack.c.b16 %v2389, %v2385
        %v2554 = vpack.c.b16 %v2390, %v2386
        %v2555 = vpack.c.b16 %v2391, %v2387
        %v2556 = vpack.c.b16 %v2396, %v2392
        %v2557 = vpack.c.b16 %v2397, %v2393
        %v2558 = vpack.c.b16 %v2398, %v2394
        %v2559 = vpack.c.b16 %v2399, %v2395
        %v2560 = vpack.c.b16 %v2404, %v2400
        %v2561 = vpack.c.b16 %v2405, %v2401
        %v2562 = vpack.c.b16 %v2406, %v2402
        %v2563 = vpack.c.b16 %v2407, %v2403
        %v2564 = vpack.c.b16 %v2412, %v2408
        %v2565 = vpack.c.b16 %v2413, %v2409
        %v2566 = vpack.c.b16 %v2414, %v2410
        %v2567 = vpack.c.b16 %v2415, %v2411
        %v2568 = vpack.c.b16 %v2420, %v2416
        %v2569 = vpack.c.b16 %v2421, %v2417
        %v2570 = vpack.c.b16 %v2422, %v2418
        %v2571 = vpack.c.b16 %v2423, %v2419
        %v2572 = vpack.c.b16 %v2428, %v2424
        %v2573 = vpack.c.b16 %v2429, %v2425
        %v2574 = vpack.c.b16 %v2430, %v2426
        %v2575 = vpack.c.b16 %v2431, %v2427
        %v2576 = vpack.c.b16 %v2436, %v2432
        %v2577 = vpack.c.b16 %v2437, %v2433
        %v2578 = vpack.c.b16 %v2438, %v2434
        %v2579 = vpack.c.b16 %v2439, %v2435
        %v2580 = vpack.c.b16 %v2444, %v2440
        %v2581 = vpack.c.b16 %v2445, %v2441
        %v2582 = vpack.c.b16 %v2446, %v2442
        %v2583 = vpack.c.b16 %v2447, %v2443
        %v2584 = vpack.c.b16 %v2452, %v2448
        %v2585 = vpack.c.b16 %v2453, %v2449
        %v2586 = vpack.c.b16 %v2454, %v2450
        %v2587 = vpack.c.b16 %v2455, %v2451
        %v2588 = vpack.c.b16 %v2460, %v2456
        %v2589 = vpack.c.b16 %v2461, %v2457
        %v2590 = vpack.c.b16 %v2462, %v2458
        %v2591 = vpack.c.b16 %v2463, %v2459
        %2720 = vmatpush.bf16.msra.mxu0 %v2492
        %2721 = vmatpush.bf16.msra.mxu0 %v2488
        %2722 = vmatpush.bf16.msra.mxu0 %v2484
        %2723 = vmatpush.bf16.msra.mxu0 %v2480
        %2724 = vmatpush.bf16.msra.mxu0 %v2476
        %2725 = vmatpush.bf16.msra.mxu0 %v2472
        %2726 = vmatpush.bf16.msra.mxu0 %v2468
        %2727 = vmatpush.bf16.msra.mxu0 %v2464
        %2728 = vmatmul.bf16.gmra.mxu0 %v1939
        %v2729 = vpop.f32.mrf.mxu0
        %v2730 = vadd.f32 %v2072, %v2729
        %v2731 = vpop.f32.mrf.mxu0
        %v2732 = vadd.f32 %v2072, %v2731
        %2733 = vdwg.mxu0
        %2734 = vmatpush.bf16.msra.mxu0 %v2524
        %2735 = vmatpush.bf16.msra.mxu0 %v2520
        %2736 = vmatpush.bf16.msra.mxu0 %v2516
        %2737 = vmatpush.bf16.msra.mxu0 %v2512
        %2738 = vmatpush.bf16.msra.mxu0 %v2508
        %2739 = vmatpush.bf16.msra.mxu0 %v2504
        %2740 = vmatpush.bf16.msra.mxu0 %v2500
        %2741 = vmatpush.bf16.msra.mxu0 %v2496
        %2742 = vmatmul.bf16.gmra.mxu0 %v1940
        %v2743 = vpop.f32.mrf.mxu0
        %v2744 = vadd.f32 %v2730, %v2743
        %v2745 = vpop.f32.mrf.mxu0
        %v2746 = vadd.f32 %v2732, %v2745
        %2747 = vdwg.mxu0
        %2748 = vmatpush.bf16.msra.mxu0 %v2556
        %2749 = vmatpush.bf16.msra.mxu0 %v2552
        %2750 = vmatpush.bf16.msra.mxu0 %v2548
        %2751 = vmatpush.bf16.msra.mxu0 %v2544
        %2752 = vmatpush.bf16.msra.mxu0 %v2540
        %2753 = vmatpush.bf16.msra.mxu0 %v2536
        %2754 = vmatpush.bf16.msra.mxu0 %v2532
        %2755 = vmatpush.bf16.msra.mxu0 %v2528
        %2756 = vmatmul.bf16.gmra.mxu0 %v1941
        %v2757 = vpop.f32.mrf.mxu0
        %v2758 = vadd.f32 %v2744, %v2757
        %v2759 = vpop.f32.mrf.mxu0
        %v2760 = vadd.f32 %v2746, %v2759
        %2761 = vdwg.mxu0
        %2762 = vmatpush.bf16.msra.mxu0 %v2588
        %2763 = vmatpush.bf16.msra.mxu0 %v2584
        %2764 = vmatpush.bf16.msra.mxu0 %v2580
        %2765 = vmatpush.bf16.msra.mxu0 %v2576
        %2766 = vmatpush.bf16.msra.mxu0 %v2572
        %2767 = vmatpush.bf16.msra.mxu0 %v2568
        %2768 = vmatpush.bf16.msra.mxu0 %v2564
        %2769 = vmatpush.bf16.msra.mxu0 %v2560
        %2770 = vmatmul.bf16.gmra.mxu0 %v1942
        %v2771 = vpop.f32.mrf.mxu0
        %v2772 = vadd.f32 %v2758, %v2771
        %v2773 = vpop.f32.mrf.mxu0
        %v2774 = vadd.f32 %v2760, %v2773
        %2775 = vdwg.mxu0
        %2776 = vmatpush.bf16.msra.mxu0 %v2493
        %2777 = vmatpush.bf16.msra.mxu0 %v2489
        %2778 = vmatpush.bf16.msra.mxu0 %v2485
        %2779 = vmatpush.bf16.msra.mxu0 %v2481
        %2780 = vmatpush.bf16.msra.mxu0 %v2477
        %2781 = vmatpush.bf16.msra.mxu0 %v2473
        %2782 = vmatpush.bf16.msra.mxu0 %v2469
        %2783 = vmatpush.bf16.msra.mxu0 %v2465
        %2784 = vmatmul.bf16.gmra.mxu0 %v1939
        %v2785 = vpop.f32.mrf.mxu0
        %v2786 = vadd.f32 %v2073, %v2785
        %v2787 = vpop.f32.mrf.mxu0
        %v2788 = vadd.f32 %v2073, %v2787
        %2789 = vdwg.mxu0
        %2790 = vmatpush.bf16.msra.mxu0 %v2525
        %2791 = vmatpush.bf16.msra.mxu0 %v2521
        %2792 = vmatpush.bf16.msra.mxu0 %v2517
        %2793 = vmatpush.bf16.msra.mxu0 %v2513
        %2794 = vmatpush.bf16.msra.mxu0 %v2509
        %2795 = vmatpush.bf16.msra.mxu0 %v2505
        %2796 = vmatpush.bf16.msra.mxu0 %v2501
        %2797 = vmatpush.bf16.msra.mxu0 %v2497
        %2798 = vmatmul.bf16.gmra.mxu0 %v1940
        %v2799 = vpop.f32.mrf.mxu0
        %v2800 = vadd.f32 %v2786, %v2799
        %v2801 = vpop.f32.mrf.mxu0
        %v2802 = vadd.f32 %v2788, %v2801
        %2803 = vdwg.mxu0
        %2804 = vmatpush.bf16.msra.mxu0 %v2557
        %2805 = vmatpush.bf16.msra.mxu0 %v2553
        %2806 = vmatpush.bf16.msra.mxu0 %v2549
        %2807 = vmatpush.bf16.msra.mxu0 %v2545
        %2808 = vmatpush.bf16.msra.mxu0 %v2541
        %2809 = vmatpush.bf16.msra.mxu0 %v2537
        %2810 = vmatpush.bf16.msra.mxu0 %v2533
        %2811 = vmatpush.bf16.msra.mxu0 %v2529
        %2812 = vmatmul.bf16.gmra.mxu0 %v1941
        %v2813 = vpop.f32.mrf.mxu0
        %v2814 = vadd.f32 %v2800, %v2813
        %v2815 = vpop.f32.mrf.mxu0
        %v2816 = vadd.f32 %v2802, %v2815
        %2817 = vdwg.mxu0
        %2818 = vmatpush.bf16.msra.mxu0 %v2589
        %2819 = vmatpush.bf16.msra.mxu0 %v2585
        %2820 = vmatpush.bf16.msra.mxu0 %v2581
        %2821 = vmatpush.bf16.msra.mxu0 %v2577
        %2822 = vmatpush.bf16.msra.mxu0 %v2573
        %2823 = vmatpush.bf16.msra.mxu0 %v2569
        %2824 = vmatpush.bf16.msra.mxu0 %v2565
        %2825 = vmatpush.bf16.msra.mxu0 %v2561
        %2826 = vmatmul.bf16.gmra.mxu0 %v1942
        %v2827 = vpop.f32.mrf.mxu0
        %v2828 = vadd.f32 %v2814, %v2827
        %v2829 = vpop.f32.mrf.mxu0
        %v2830 = vadd.f32 %v2816, %v2829
        %2831 = vdwg.mxu0
        %2832 = vmatpush.bf16.msra.mxu0 %v2494
        %2833 = vmatpush.bf16.msra.mxu0 %v2490
        %2834 = vmatpush.bf16.msra.mxu0 %v2486
        %2835 = vmatpush.bf16.msra.mxu0 %v2482
        %2836 = vmatpush.bf16.msra.mxu0 %v2478
        %2837 = vmatpush.bf16.msra.mxu0 %v2474
        %2838 = vmatpush.bf16.msra.mxu0 %v2470
        %2839 = vmatpush.bf16.msra.mxu0 %v2466
        %2840 = vmatmul.bf16.gmra.mxu0 %v1939
        %v2841 = vpop.f32.mrf.mxu0
        %v2842 = vadd.f32 %v2074, %v2841
        %v2843 = vpop.f32.mrf.mxu0
        %v2844 = vadd.f32 %v2074, %v2843
        %2845 = vdwg.mxu0
        %2846 = vmatpush.bf16.msra.mxu0 %v2526
        %2847 = vmatpush.bf16.msra.mxu0 %v2522
        %2848 = vmatpush.bf16.msra.mxu0 %v2518
        %2849 = vmatpush.bf16.msra.mxu0 %v2514
        %2850 = vmatpush.bf16.msra.mxu0 %v2510
        %2851 = vmatpush.bf16.msra.mxu0 %v2506
        %2852 = vmatpush.bf16.msra.mxu0 %v2502
        %2853 = vmatpush.bf16.msra.mxu0 %v2498
        %2854 = vmatmul.bf16.gmra.mxu0 %v1940
        %v2855 = vpop.f32.mrf.mxu0
        %v2856 = vadd.f32 %v2842, %v2855
        %v2857 = vpop.f32.mrf.mxu0
        %v2858 = vadd.f32 %v2844, %v2857
        %2859 = vdwg.mxu0
        %2860 = vmatpush.bf16.msra.mxu0 %v2558
        %2861 = vmatpush.bf16.msra.mxu0 %v2554
        %2862 = vmatpush.bf16.msra.mxu0 %v2550
        %2863 = vmatpush.bf16.msra.mxu0 %v2546
        %2864 = vmatpush.bf16.msra.mxu0 %v2542
        %2865 = vmatpush.bf16.msra.mxu0 %v2538
        %2866 = vmatpush.bf16.msra.mxu0 %v2534
        %2867 = vmatpush.bf16.msra.mxu0 %v2530
        %2868 = vmatmul.bf16.gmra.mxu0 %v1941
        %v2869 = vpop.f32.mrf.mxu0
        %v2870 = vadd.f32 %v2856, %v2869
        %v2871 = vpop.f32.mrf.mxu0
        %v2872 = vadd.f32 %v2858, %v2871
        %2873 = vdwg.mxu0
        %2874 = vmatpush.bf16.msra.mxu0 %v2590
        %2875 = vmatpush.bf16.msra.mxu0 %v2586
        %2876 = vmatpush.bf16.msra.mxu0 %v2582
        %2877 = vmatpush.bf16.msra.mxu0 %v2578
        %2878 = vmatpush.bf16.msra.mxu0 %v2574
        %2879 = vmatpush.bf16.msra.mxu0 %v2570
        %2880 = vmatpush.bf16.msra.mxu0 %v2566
        %2881 = vmatpush.bf16.msra.mxu0 %v2562
        %2882 = vmatmul.bf16.gmra.mxu0 %v1942
        %v2883 = vpop.f32.mrf.mxu0
        %v2884 = vadd.f32 %v2870, %v2883
        %v2885 = vpop.f32.mrf.mxu0
        %v2886 = vadd.f32 %v2872, %v2885
        %2887 = vdwg.mxu0
        %2888 = vmatpush.bf16.msra.mxu0 %v2495
        %2889 = vmatpush.bf16.msra.mxu0 %v2491
        %2890 = vmatpush.bf16.msra.mxu0 %v2487
        %2891 = vmatpush.bf16.msra.mxu0 %v2483
        %2892 = vmatpush.bf16.msra.mxu0 %v2479
        %2893 = vmatpush.bf16.msra.mxu0 %v2475
        %2894 = vmatpush.bf16.msra.mxu0 %v2471
        %2895 = vmatpush.bf16.msra.mxu0 %v2467
        %2896 = vmatmul.bf16.gmra.mxu0 %v1939
        %v2897 = vpop.f32.mrf.mxu0
        %v2898 = vadd.f32 %v2075, %v2897
        %v2899 = vpop.f32.mrf.mxu0
        %v2900 = vadd.f32 %v2075, %v2899
        %2901 = vdwg.mxu0
        %2902 = vmatpush.bf16.msra.mxu0 %v2527
        %2903 = vmatpush.bf16.msra.mxu0 %v2523
        %2904 = vmatpush.bf16.msra.mxu0 %v2519
        %2905 = vmatpush.bf16.msra.mxu0 %v2515
        %2906 = vmatpush.bf16.msra.mxu0 %v2511
        %2907 = vmatpush.bf16.msra.mxu0 %v2507
        %2908 = vmatpush.bf16.msra.mxu0 %v2503
        %2909 = vmatpush.bf16.msra.mxu0 %v2499
        %2910 = vmatmul.bf16.gmra.mxu0 %v1940
        %v2911 = vpop.f32.mrf.mxu0
        %v2912 = vadd.f32 %v2898, %v2911
        %v2913 = vpop.f32.mrf.mxu0
        %v2914 = vadd.f32 %v2900, %v2913
        %2915 = vdwg.mxu0
        %2916 = vmatpush.bf16.msra.mxu0 %v2559
        %2917 = vmatpush.bf16.msra.mxu0 %v2555
        %2918 = vmatpush.bf16.msra.mxu0 %v2551
        %2919 = vmatpush.bf16.msra.mxu0 %v2547
        %2920 = vmatpush.bf16.msra.mxu0 %v2543
        %2921 = vmatpush.bf16.msra.mxu0 %v2539
        %2922 = vmatpush.bf16.msra.mxu0 %v2535
        %2923 = vmatpush.bf16.msra.mxu0 %v2531
        %2924 = vmatmul.bf16.gmra.mxu0 %v1941
        %v2925 = vpop.f32.mrf.mxu0
        %v2926 = vadd.f32 %v2912, %v2925
        %v2927 = vpop.f32.mrf.mxu0
        %v2928 = vadd.f32 %v2914, %v2927
        %2929 = vdwg.mxu0
        %2930 = vmatpush.bf16.msra.mxu0 %v2591
        %2931 = vmatpush.bf16.msra.mxu0 %v2587
        %2932 = vmatpush.bf16.msra.mxu0 %v2583
        %2933 = vmatpush.bf16.msra.mxu0 %v2579
        %2934 = vmatpush.bf16.msra.mxu0 %v2575
        %2935 = vmatpush.bf16.msra.mxu0 %v2571
        %2936 = vmatpush.bf16.msra.mxu0 %v2567
        %2937 = vmatpush.bf16.msra.mxu0 %v2563
        %2938 = vmatmul.bf16.gmra.mxu0 %v1942
        %v2939 = vpop.f32.mrf.mxu0
        %v2940 = vadd.f32 %v2926, %v2939
        %v2941 = vpop.f32.mrf.mxu0
        %v2942 = vadd.f32 %v2928, %v2941
        %2943 = vdwg.mxu0
        %v2944 = vmax.f32 %v2772, 0.0
        %v2945 = vmax.f32 %v2828, 0.0
        %v2946 = vmax.f32 %v2884, 0.0
        %v2947 = vmax.f32 %v2940, 0.0
        %v2948 = vmax.f32 %v2774, 0.0
        %v2949 = vmax.f32 %v2830, 0.0
        %v2950 = vmax.f32 %v2886, 0.0
        %v2951 = vmax.f32 %v2942, 0.0
        %v2952 = vpack.c.bf16 %v2948, %v2944
        %v2953 = vpack.c.bf16 %v2949, %v2945
        %v2954 = vpack.c.bf16 %v2950, %v2946
        %v2955 = vpack.c.bf16 %v2951, %v2947
        %v2956 = vld [vmem:[%s5] sm:$0xf]
        %v2957 = vld [vmem:[%s5 + $0x4] sm:$0xf]
        %v2958 = vld [vmem:[%s5 + $0x8] sm:$0xf]
        %v2959 = vld [vmem:[%s5 + $0xc] sm:$0xf]
        %v2960 = vld [vmem:[%s5 + $0x10] sm:$0xf]
        %v2961 = vld [vmem:[%s5 + $0x14] sm:$0xf]
        %v2962 = vld [vmem:[%s5 + $0x18] sm:$0xf]
        %v2963 = vld [vmem:[%s5 + $0x1c] sm:$0xf]
        %v2964 = vld [vmem:[%s5 + $0x20] sm:$0xf]
        %v2965 = vld [vmem:[%s5 + $0x24] sm:$0xf]
        %v2966 = vld [vmem:[%s5 + $0x28] sm:$0xf]
        %v2967 = vld [vmem:[%s5 + $0x2c] sm:$0xf]
        %v2968 = vld [vmem:[%s5 + $0x30] sm:$0xf]
        %v2969 = vld [vmem:[%s5 + $0x34] sm:$0xf]
        %v2970 = vld [vmem:[%s5 + $0x38] sm:$0xf]
        %v2971 = vld [vmem:[%s5 + $0x3c] sm:$0xf]
        %v2972 = vld [vmem:[%s5 + $0x40] sm:$0xf]
        %v2973 = vld [vmem:[%s5 + $0x44] sm:$0xf]
        %v2974 = vld [vmem:[%s5 + $0x48] sm:$0xf]
        %v2975 = vld [vmem:[%s5 + $0x4c] sm:$0xf]
        %v2976 = vld [vmem:[%s5 + $0x50] sm:$0xf]
        %v2977 = vld [vmem:[%s5 + $0x54] sm:$0xf]
        %v2978 = vld [vmem:[%s5 + $0x58] sm:$0xf]
        %v2979 = vld [vmem:[%s5 + $0x5c] sm:$0xf]
        %v2980 = vld [vmem:[%s5 + $0x60] sm:$0xf]
        %v2981 = vld [vmem:[%s5 + $0x64] sm:$0xf]
        %v2982 = vld [vmem:[%s5 + $0x68] sm:$0xf]
        %v2983 = vld [vmem:[%s5 + $0x6c] sm:$0xf]
        %v2984 = vld [vmem:[%s5 + $0x70] sm:$0xf]
        %v2985 = vld [vmem:[%s5 + $0x74] sm:$0xf]
        %v2986 = vld [vmem:[%s5 + $0x78] sm:$0xf]
        %v2987 = vld [vmem:[%s5 + $0x7c] sm:$0xf]
        %v2988 = vld [vmem:[%s5 + $0x80] sm:$0xf]
        %v2989 = vld [vmem:[%s5 + $0x84] sm:$0xf]
        %v2990 = vld [vmem:[%s5 + $0x88] sm:$0xf]
        %v2991 = vld [vmem:[%s5 + $0x8c] sm:$0xf]
        %v2992 = vld [vmem:[%s5 + $0x90] sm:$0xf]
        %v2993 = vld [vmem:[%s5 + $0x94] sm:$0xf]
        %v2994 = vld [vmem:[%s5 + $0x98] sm:$0xf]
        %v2995 = vld [vmem:[%s5 + $0x9c] sm:$0xf]
        %v2996 = vld [vmem:[%s5 + $0xa0] sm:$0xf]
        %v2997 = vld [vmem:[%s5 + $0xa4] sm:$0xf]
        %v2998 = vld [vmem:[%s5 + $0xa8] sm:$0xf]
        %v2999 = vld [vmem:[%s5 + $0xac] sm:$0xf]
        %v3000 = vld [vmem:[%s5 + $0xb0] sm:$0xf]
        %v3001 = vld [vmem:[%s5 + $0xb4] sm:$0xf]
        %v3002 = vld [vmem:[%s5 + $0xb8] sm:$0xf]
        %v3003 = vld [vmem:[%s5 + $0xbc] sm:$0xf]
        %v3004 = vld [vmem:[%s5 + $0xc0] sm:$0xf]
        %v3005 = vld [vmem:[%s5 + $0xc4] sm:$0xf]
        %v3006 = vld [vmem:[%s5 + $0xc8] sm:$0xf]
        %v3007 = vld [vmem:[%s5 + $0xcc] sm:$0xf]
        %v3008 = vld [vmem:[%s5 + $0xd0] sm:$0xf]
        %v3009 = vld [vmem:[%s5 + $0xd4] sm:$0xf]
        %v3010 = vld [vmem:[%s5 + $0xd8] sm:$0xf]
        %v3011 = vld [vmem:[%s5 + $0xdc] sm:$0xf]
        %v3012 = vld [vmem:[%s5 + $0xe0] sm:$0xf]
        %v3013 = vld [vmem:[%s5 + $0xe4] sm:$0xf]
        %v3014 = vld [vmem:[%s5 + $0xe8] sm:$0xf]
        %v3015 = vld [vmem:[%s5 + $0xec] sm:$0xf]
        %v3016 = vld [vmem:[%s5 + $0xf0] sm:$0xf]
        %v3017 = vld [vmem:[%s5 + $0xf4] sm:$0xf]
        %v3018 = vld [vmem:[%s5 + $0xf8] sm:$0xf]
        %v3019 = vld [vmem:[%s5 + $0xfc] sm:$0xf]
        %v3021 = vperm.slane %v349, 0
        %v3087 = vunpack.c.l.b16 %v2956
        %v3088 = vunpack.c.l.b16 %v2957
        %v3089 = vunpack.c.l.b16 %v2958
        %v3090 = vunpack.c.l.b16 %v2959
        %v3091 = vunpack.c.l.b16 %v2960
        %v3092 = vunpack.c.l.b16 %v2961
        %v3093 = vunpack.c.l.b16 %v2962
        %v3094 = vunpack.c.l.b16 %v2963
        %v3095 = vunpack.c.l.b16 %v2964
        %v3096 = vunpack.c.l.b16 %v2965
        %v3097 = vunpack.c.l.b16 %v2966
        %v3098 = vunpack.c.l.b16 %v2967
        %v3099 = vunpack.c.l.b16 %v2968
        %v3100 = vunpack.c.l.b16 %v2969
        %v3101 = vunpack.c.l.b16 %v2970
        %v3102 = vunpack.c.l.b16 %v2971
        %v3103 = vunpack.c.l.b16 %v2972
        %v3104 = vunpack.c.l.b16 %v2973
        %v3105 = vunpack.c.l.b16 %v2974
        %v3106 = vunpack.c.l.b16 %v2975
        %v3107 = vunpack.c.l.b16 %v2976
        %v3108 = vunpack.c.l.b16 %v2977
        %v3109 = vunpack.c.l.b16 %v2978
        %v3110 = vunpack.c.l.b16 %v2979
        %v3111 = vunpack.c.l.b16 %v2980
        %v3112 = vunpack.c.l.b16 %v2981
        %v3113 = vunpack.c.l.b16 %v2982
        %v3114 = vunpack.c.l.b16 %v2983
        %v3115 = vunpack.c.l.b16 %v2984
        %v3116 = vunpack.c.l.b16 %v2985
        %v3117 = vunpack.c.l.b16 %v2986
        %v3118 = vunpack.c.l.b16 %v2987
        %v3119 = vunpack.c.l.b16 %v2988
        %v3120 = vunpack.c.l.b16 %v2989
        %v3121 = vunpack.c.l.b16 %v2990
        %v3122 = vunpack.c.l.b16 %v2991
        %v3123 = vunpack.c.l.b16 %v2992
        %v3124 = vunpack.c.l.b16 %v2993
        %v3125 = vunpack.c.l.b16 %v2994
        %v3126 = vunpack.c.l.b16 %v2995
        %v3127 = vunpack.c.l.b16 %v2996
        %v3128 = vunpack.c.l.b16 %v2997
        %v3129 = vunpack.c.l.b16 %v2998
        %v3130 = vunpack.c.l.b16 %v2999
        %v3131 = vunpack.c.l.b16 %v3000
        %v3132 = vunpack.c.l.b16 %v3001
        %v3133 = vunpack.c.l.b16 %v3002
        %v3134 = vunpack.c.l.b16 %v3003
        %v3135 = vunpack.c.l.b16 %v3004
        %v3136 = vunpack.c.l.b16 %v3005
        %v3137 = vunpack.c.l.b16 %v3006
        %v3138 = vunpack.c.l.b16 %v3007
        %v3139 = vunpack.c.l.b16 %v3008
        %v3140 = vunpack.c.l.b16 %v3009
        %v3141 = vunpack.c.l.b16 %v3010
        %v3142 = vunpack.c.l.b16 %v3011
        %v3143 = vunpack.c.l.b16 %v3012
        %v3144 = vunpack.c.l.b16 %v3013
        %v3145 = vunpack.c.l.b16 %v3014
        %v3146 = vunpack.c.l.b16 %v3015
        %v3147 = vunpack.c.l.b16 %v3016
        %v3148 = vunpack.c.l.b16 %v3017
        %v3149 = vunpack.c.l.b16 %v3018
        %v3150 = vunpack.c.l.b16 %v3019
        %v3151 = vpack.c.b16 %v3088, %v3087
        %v3152 = vpack.c.b16 %v3090, %v3089
        %v3153 = vpack.c.b16 %v3092, %v3091
        %v3154 = vpack.c.b16 %v3094, %v3093
        %v3155 = vpack.c.b16 %v3096, %v3095
        %v3156 = vpack.c.b16 %v3098, %v3097
        %v3157 = vpack.c.b16 %v3100, %v3099
        %v3158 = vpack.c.b16 %v3102, %v3101
        %v3159 = vpack.c.b16 %v3104, %v3103
        %v3160 = vpack.c.b16 %v3106, %v3105
        %v3161 = vpack.c.b16 %v3108, %v3107
        %v3162 = vpack.c.b16 %v3110, %v3109
        %v3163 = vpack.c.b16 %v3112, %v3111
        %v3164 = vpack.c.b16 %v3114, %v3113
        %v3165 = vpack.c.b16 %v3116, %v3115
        %v3166 = vpack.c.b16 %v3118, %v3117
        %v3167 = vpack.c.b16 %v3120, %v3119
        %v3168 = vpack.c.b16 %v3122, %v3121
        %v3169 = vpack.c.b16 %v3124, %v3123
        %v3170 = vpack.c.b16 %v3126, %v3125
        %v3171 = vpack.c.b16 %v3128, %v3127
        %v3172 = vpack.c.b16 %v3130, %v3129
        %v3173 = vpack.c.b16 %v3132, %v3131
        %v3174 = vpack.c.b16 %v3134, %v3133
        %v3175 = vpack.c.b16 %v3136, %v3135
        %v3176 = vpack.c.b16 %v3138, %v3137
        %v3177 = vpack.c.b16 %v3140, %v3139
        %v3178 = vpack.c.b16 %v3142, %v3141
        %v3179 = vpack.c.b16 %v3144, %v3143
        %v3180 = vpack.c.b16 %v3146, %v3145
        %v3181 = vpack.c.b16 %v3148, %v3147
        %v3182 = vpack.c.b16 %v3150, %v3149
        %3215 = vmatpush.bf16.msra.mxu0 %v3158
        %3216 = vmatpush.bf16.msra.mxu0 %v3157
        %3217 = vmatpush.bf16.msra.mxu0 %v3156
        %3218 = vmatpush.bf16.msra.mxu0 %v3155
        %3219 = vmatpush.bf16.msra.mxu0 %v3154
        %3220 = vmatpush.bf16.msra.mxu0 %v3153
        %3221 = vmatpush.bf16.msra.mxu0 %v3152
        %3222 = vmatpush.bf16.msra.mxu0 %v3151
        %3223 = vmatmul.bf16.gmra.mxu0 %v2952
        %v3224 = vpop.f32.mrf.mxu0
        %v3225 = vadd.f32 %v3021, %v3224
        %v3226 = vpop.f32.mrf.mxu0
        %v3227 = vadd.f32 %v3021, %v3226
        %3228 = vdwg.mxu0
        %3229 = vmatpush.bf16.msra.mxu0 %v3166
        %3230 = vmatpush.bf16.msra.mxu0 %v3165
        %3231 = vmatpush.bf16.msra.mxu0 %v3164
        %3232 = vmatpush.bf16.msra.mxu0 %v3163
        %3233 = vmatpush.bf16.msra.mxu0 %v3162
        %3234 = vmatpush.bf16.msra.mxu0 %v3161
        %3235 = vmatpush.bf16.msra.mxu0 %v3160
        %3236 = vmatpush.bf16.msra.mxu0 %v3159
        %3237 = vmatmul.bf16.gmra.mxu0 %v2953
        %v3238 = vpop.f32.mrf.mxu0
        %v3239 = vadd.f32 %v3225, %v3238
        %v3240 = vpop.f32.mrf.mxu0
        %v3241 = vadd.f32 %v3227, %v3240
        %3242 = vdwg.mxu0
        %3243 = vmatpush.bf16.msra.mxu0 %v3174
        %3244 = vmatpush.bf16.msra.mxu0 %v3173
        %3245 = vmatpush.bf16.msra.mxu0 %v3172
        %3246 = vmatpush.bf16.msra.mxu0 %v3171
        %3247 = vmatpush.bf16.msra.mxu0 %v3170
        %3248 = vmatpush.bf16.msra.mxu0 %v3169
        %3249 = vmatpush.bf16.msra.mxu0 %v3168
        %3250 = vmatpush.bf16.msra.mxu0 %v3167
        %3251 = vmatmul.bf16.gmra.mxu0 %v2954
        %v3252 = vpop.f32.mrf.mxu0
        %v3253 = vadd.f32 %v3239, %v3252
        %v3254 = vpop.f32.mrf.mxu0
        %v3255 = vadd.f32 %v3241, %v3254
        %3256 = vdwg.mxu0
        %3257 = vmatpush.bf16.msra.mxu0 %v3182
        %3258 = vmatpush.bf16.msra.mxu0 %v3181
        %3259 = vmatpush.bf16.msra.mxu0 %v3180
        %3260 = vmatpush.bf16.msra.mxu0 %v3179
        %3261 = vmatpush.bf16.msra.mxu0 %v3178
        %3262 = vmatpush.bf16.msra.mxu0 %v3177
        %3263 = vmatpush.bf16.msra.mxu0 %v3176
        %3264 = vmatpush.bf16.msra.mxu0 %v3175
        %3265 = vmatmul.bf16.gmra.mxu0 %v2955
        %v3266 = vpop.f32.mrf.mxu0
        %v3267 = vadd.f32 %v3253, %v3266
        %v3268 = vpop.f32.mrf.mxu0
        %v3269 = vadd.f32 %v3255, %v3268
        %3270 = vdwg.mxu0
        %3271 = vst [vmem:[%s302] sm:$0xff] %v3267
        %3272 = vst [vmem:[%s302 + $0x8] sm:$0xff] %v3269
        %s3273 = sand.u32 %s179, 1
        %s3274 = sand.u32 %s179, 1
        %s3275 = smul.addr %s3274, 16
        %s3276 = scalar_lea.vmem [#allocation4], %s3275
        // Predicated region
        $region53: #{net_forward.1} parent=47 // pred_check
          %p3277 = pneg %p189
        $region54: #{net_forward.1} parent=47 // pred_check_branch
          %3279 = sbr.rel (%p3277) target = $region56
        $region55: #{net_forward.1} parent=47 // pred_region
          %s3280 = smul.u32 2, %s19
          %s3281 = ssub.s32 3, %s3280
          %p3282 = scmp.lt.s32.totalorder %s3281, 2
          %s3283 = scalar_select %p3282, %s3281, 2
          %s3284 = smul.u32 8, %s3283
          %p3285 = scmp.ne.s32.totalorder 0, %s3284
          %s3286 = smul.addr %s3280, 8
          %s3287 = scalar_lea.vmem %s7, %s3286
          // Predicated region
          $region57: #{net_forward.1} parent=55 // pred_check
            %p3288 = pneg %p3285
          $region58: #{net_forward.1} parent=55 // pred_check_branch
            %3290 = sbr.rel (%p3288) target = $region60
          $region59: #{net_forward.1} parent=55 // pred_region
            // Predicated region
            $region61: #{net_forward.1} parent=59 // pred_check
              _
            $region62: #{net_forward.1} parent=59 // pred_check_branch
              %3292 = sbr.rel (0) target = $region64
            $region63: #{net_forward.1} parent=59 // pred_region
              // Predicated region
              $region83: #{net_forward.1} parent=63 // pred_check
                _
              $region84: #{net_forward.1} parent=63 // pred_check_branch
                %3344 = sbr.rel (0) target = $region86
              $region85: #{net_forward.1} parent=63 // pred_region
                %s3345 = sshrl.u32 %s3283, 1
                // While loop
                $region87: #{net_forward.1} parent=85 // loop_pre_header
                  _
                $region88: #{net_forward.1} parent=85 // loop_header
                  %s3347 = sphi 0, %s3349
                  %p3348 = scmp.ge.s32.totalorder %s3347, %s3345
                  %s3352 = sphi 0, %s3361
                  %s3353 = sphi %s3276, %s3364
                  %s3354 = sphi %s3287, %s3365
                $region89: #{net_forward.1} parent=85 // loop_header_branch
                  %3351 = sbr.rel (%p3348) target = $region93
                $region90: #{net_forward.1} parent=85 // loop_body
                  %v3355 = vld [vmem:[%s3353] sm:$0xff]
                  %3356 = vst [vmem:[%s3354] sm:$0xff] %v3355
                  %v3357 = vld [vmem:[%s3353 + $0x8] sm:$0xff]
                  %3358 = vst [vmem:[%s3354 + $0x8] sm:$0xff] %v3357
                  %s3359 = sadd.s32 1, %s3352
                  %p3360 = scmp.ge.s32.totalorder %s3359, %s3345
                  %s3361 = scalar_select %p3360, 0, %s3359
                  %s3362 = smul.u32 %s3361, 16
                  %s3363 = smul.u32 %s3361, 16
                  %s3364 = scalar_lea.vmem %s3276, %s3362 [#allocation4]
                  %s3365 = scalar_lea.vmem %s3287, %s3363
                $region91: #{net_forward.1} parent=85 // loop_footer
                  %s3349 = sadd.s32 %s3347, 1
                $region92: #{net_forward.1} parent=85 // loop_footer_branch
                  %3346 = sbr.rel target = $region88
                $region93: #{net_forward.1} parent=85 // loop_exit
                  _
                %s3366 = sshrl.u32 %s3283, 1
                %s3367 = sand.u32 %s3283, 1
                %s3368 = smul.u32 %s3366, 2
                %s3369 = smul.u32 8, %s3368
                %s3370 = scalar_lea.vmem %s3276, %s3369 [#allocation4]
                %s3371 = smul.u32 8, %s3368
                %s3372 = scalar_lea.vmem %s3287, %s3371
                // While loop
                $region94: #{net_forward.1} parent=85 // loop_pre_header
                  _
                $region95: #{net_forward.1} parent=85 // loop_header
                  %s3374 = sphi 0, %s3376
                  %p3375 = scmp.ge.s32.totalorder %s3374, %s3367
                  %s3379 = sphi 0, %s3386
                  %s3380 = sphi %s3370, %s3389
                  %s3381 = sphi %s3372, %s3390
                $region96: #{net_forward.1} parent=85 // loop_header_branch
                  %3378 = sbr.rel (%p3375) target = $region100
                $region97: #{net_forward.1} parent=85 // loop_body
                  %v3382 = vld [vmem:[%s3380] sm:$0xff]
                  %3383 = vst [vmem:[%s3381] sm:$0xff] %v3382
                  %s3384 = sadd.s32 1, %s3379
                  %p3385 = scmp.ge.s32.totalorder %s3384, %s3367
                  %s3386 = scalar_select %p3385, 0, %s3384
                  %s3387 = smul.u32 %s3386, 8
                  %s3388 = smul.u32 %s3386, 8
                  %s3389 = scalar_lea.vmem %s3370, %s3387 [#allocation4]
                  %s3390 = scalar_lea.vmem %s3372, %s3388
                $region98: #{net_forward.1} parent=85 // loop_footer
                  %s3376 = sadd.s32 %s3374, 1
                $region99: #{net_forward.1} parent=85 // loop_footer_branch
                  %3373 = sbr.rel target = $region95
                $region100: #{net_forward.1} parent=85 // loop_exit
                  _
              $region86: #{net_forward.1} parent=63 // pred_fallthru
                _
              // Predicated region
              $region101: #{net_forward.1} parent=63 // pred_check
                _
              $region102: #{net_forward.1} parent=63 // pred_check_branch
                %3392 = sbr.rel target = $region104
              $region103: #{net_forward.1} parent=63 // pred_region
                _
              $region104: #{net_forward.1} parent=63 // pred_fallthru
                _
            $region64: #{net_forward.1} parent=59 // pred_fallthru
              _
            // Predicated region
            $region65: #{net_forward.1} parent=59 // pred_check
              _
            $region66: #{net_forward.1} parent=59 // pred_check_branch
              %3294 = sbr.rel target = $region68
            $region67: #{net_forward.1} parent=59 // pred_region
              %s3296 = ssub.s32 256, 1
              %s3297 = sshrl.u32 %s3283, 1
              // While loop
              $region69: #{net_forward.1} parent=67 // loop_pre_header
                _
              $region70: #{net_forward.1} parent=67 // loop_header
                %s3299 = sphi 0, %s3301
                %p3300 = scmp.ge.s32.totalorder %s3299, %s3297
                %s3304 = sphi 0, %s3313
                %s3305 = sphi %s3276, %s3316
                %s3306 = sphi %s3287, %s3317
              $region71: #{net_forward.1} parent=67 // loop_header_branch
                %3303 = sbr.rel (%p3300) target = $region75
              $region72: #{net_forward.1} parent=67 // loop_body
                %v3307 = vld [vmem:[%s3305] sm:%s3296]
                %3308 = vst [vmem:[%s3306] sm:%s3296] %v3307
                %v3309 = vld [vmem:[%s3305 + $0x8] sm:%s3296]
                %3310 = vst [vmem:[%s3306 + $0x8] sm:%s3296] %v3309
                %s3311 = sadd.s32 1, %s3304
                %p3312 = scmp.ge.s32.totalorder %s3311, %s3297
                %s3313 = scalar_select %p3312, 0, %s3311
                %s3314 = smul.u32 %s3313, 16
                %s3315 = smul.u32 %s3313, 16
                %s3316 = scalar_lea.vmem %s3276, %s3314 [#allocation4]
                %s3317 = scalar_lea.vmem %s3287, %s3315
              $region73: #{net_forward.1} parent=67 // loop_footer
                %s3301 = sadd.s32 %s3299, 1
              $region74: #{net_forward.1} parent=67 // loop_footer_branch
                %3298 = sbr.rel target = $region70
              $region75: #{net_forward.1} parent=67 // loop_exit
                _
              %s3318 = sshrl.u32 %s3283, 1
              %s3319 = sand.u32 %s3283, 1
              %s3320 = smul.u32 %s3318, 2
              %s3321 = smul.u32 8, %s3320
              %s3322 = scalar_lea.vmem %s3276, %s3321 [#allocation4]
              %s3323 = smul.u32 8, %s3320
              %s3324 = scalar_lea.vmem %s3287, %s3323
              // While loop
              $region76: #{net_forward.1} parent=67 // loop_pre_header
                _
              $region77: #{net_forward.1} parent=67 // loop_header
                %s3326 = sphi 0, %s3328
                %p3327 = scmp.ge.s32.totalorder %s3326, %s3319
                %s3331 = sphi 0, %s3338
                %s3332 = sphi %s3322, %s3341
                %s3333 = sphi %s3324, %s3342
              $region78: #{net_forward.1} parent=67 // loop_header_branch
                %3330 = sbr.rel (%p3327) target = $region82
              $region79: #{net_forward.1} parent=67 // loop_body
                %v3334 = vld [vmem:[%s3332] sm:%s3296]
                %3335 = vst [vmem:[%s3333] sm:%s3296] %v3334
                %s3336 = sadd.s32 1, %s3331
                %p3337 = scmp.ge.s32.totalorder %s3336, %s3319
                %s3338 = scalar_select %p3337, 0, %s3336
                %s3339 = smul.u32 %s3338, 8
                %s3340 = smul.u32 %s3338, 8
                %s3341 = scalar_lea.vmem %s3322, %s3339 [#allocation4]
                %s3342 = scalar_lea.vmem %s3324, %s3340
              $region80: #{net_forward.1} parent=67 // loop_footer
                %s3328 = sadd.s32 %s3326, 1
              $region81: #{net_forward.1} parent=67 // loop_footer_branch
                %3325 = sbr.rel target = $region77
              $region82: #{net_forward.1} parent=67 // loop_exit
                _
            $region68: #{net_forward.1} parent=59 // pred_fallthru
              _
          $region60: #{net_forward.1} parent=55 // pred_fallthru
            _
          %3393 = vnop
        $region56: #{net_forward.1} parent=47 // pred_fallthru
          _
      $region48: #{net_forward.1} parent=5 // pred_fallthru
        _
      %p3394 = scmp.le.s32.totalorder 2, %s14
      // Predicated region
      $region105: #{net_forward.1} parent=5 // pred_check
        %p3395 = pneg %p3394
      $region106: #{net_forward.1} parent=5 // pred_check_branch
        %3397 = sbr.rel (%p3395) target = $region108
      $region107: #{net_forward.1} parent=5 // pred_region
        %s3398 = ssub.s32 %s14, 2
        // Predicated region
        $region109: #{net_forward.1} parent=107 // pred_check
          %p3399 = pneg %p195
        $region110: #{net_forward.1} parent=107 // pred_check_branch
          %3401 = sbr.rel (%p3399) target = $region112
        $region111: #{net_forward.1} parent=107 // pred_region
          %s3402 = sand.u32 %s180, 1
          %s3403 = sand.u32 %s180, 1
          %s3404 = smul.addr %s3403, 16
          %s3405 = scalar_lea.vmem [#allocation4], %s3404
        $region112: #{net_forward.1} parent=107 // pred_fallthru
          _
      $region108: #{net_forward.1} parent=5 // pred_fallthru
        _
    $region6: #{net_forward.1} parent=1 // loop_footer
      %s18 = sadd.s32 1, %s14
    $region7: #{net_forward.1} parent=1 // loop_footer_branch
      %13 = sbr.rel target = $region3
    $region8: #{net_forward.1} parent=1 // loop_exit
      _
    %3406 = vsyncpa [#allocation3], 1
    %s3407 = scalar_lea.sflag [#allocation3], 1
    %3408 = vsyncpa %s3407, 1

</llo_original>
